<compile_context>
chip_gen: v6e
topology: v6e:2x2x1
jax: 0.10.0
libtpu: 0.0.40
codegen_flags: <defaults>
</compile_context>

<pallas_src>
import functools

import jax
import jax.numpy as jnp
from jax.experimental import pallas as pl
from jax.experimental.pallas import tpu as pltpu

EPS = 1e-5  # nn.BatchNorm2d default eps


def _mab_kernel(x_ref, g_ref, wth_ref, wph_ref, ww_ref, wc_ref, pvec_ref,   # inputs
                out_ref, attn_ref,                                          # outputs
                s_ref, q_ref, coef_ref,                                     # VMEM scratch
                *, c_in, c_inter, p_total, mxu_dtype):
    ph = pl.program_id(0)        # 0 = statistics pass, 1 = write pass
    b = pl.program_id(1)         # batch index
    t = pl.program_id(2)         # spatial (H*W) tile
    is_first = jnp.logical_and(b == 0, t == 0)
    inv_p = 1.0 / float(p_total)

    @pl.when(jnp.logical_and(ph == 0, is_first))
    def _init():
        s_ref[...] = jnp.zeros_like(s_ref)
        q_ref[...] = jnp.zeros_like(q_ref)

    x = x_ref[0]                                    # (C, T)
    g = g_ref[0]                                    # (Cg, T)

    b_phi = pvec_ref[0:c_inter, 0:1]                # (Ci, 1)
    w_psi = pvec_ref[0:c_inter, 1:2]                # (Ci, 1)
    b_psi = pvec_ref[0:1, 6:7]                      # (1, 1)

    # --- GridAttentionBlock2D, mode="concatenation" (theta x + phi g + b) ----
    f = (jnp.dot(wth_ref[...].astype(mxu_dtype), x.astype(mxu_dtype),
                 preferred_element_type=jnp.float32)
         + jnp.dot(wph_ref[...].astype(mxu_dtype), g.astype(mxu_dtype),
                   preferred_element_type=jnp.float32)
         + b_phi)
    f = jnp.maximum(f, 0.0)                         # (Ci, T)

    # psi: single-output-channel 1x1 conv as VPU mul + sublane reduce,
    # sigmoid via EUP exp + EUP reciprocal.
    psi = jnp.sum(f * w_psi, axis=0, keepdims=True) + b_psi        # (1, T)
    sigm = pl.reciprocal(1.0 + jnp.exp(-psi), approx=False)        # (1, T)

    # y = attention * x ; W: 1x1 conv (bias dropped: cancelled by train-BN).
    y = (sigm * x).astype(mxu_dtype)
    wy = jnp.dot(ww_ref[...].astype(mxu_dtype), y,
                 preferred_element_type=jnp.float32)               # (C, T)

    @pl.when(ph == 0)
    def _phase0():
        # first + second moment accumulation (f32, MXU for the outer product).
        s_ref[...] += jnp.sum(wy, axis=1, keepdims=True)
        q_ref[...] += jax.lax.dot_general(
            wy, wy, dimension_numbers=(((1,), (1,)), ((), ())),
            preferred_element_type=jnp.float32)                    # (C, C)

    @pl.when(jnp.logical_and(ph == 1, is_first))
    def _coefs():
        # Fold both train-mode BatchNorms into per-channel affine coefficients.
        s = s_ref[...]                              # (C, 1)
        q = q_ref[...]                              # (C, C)
        gamma_w = pvec_ref[0:c_in, 2:3]
        beta_w = pvec_ref[0:c_in, 3:4]
        gamma_c = pvec_ref[0:c_in, 4:5]
        beta_c = pvec_ref[0:c_in, 5:6]

        rows_i = jax.lax.broadcasted_iota(jnp.int32, (c_in, c_in), 0)
        cols_i = jax.lax.broadcasted_iota(jnp.int32, (c_in, c_in), 1)
        diag_q = jnp.sum(jnp.where(rows_i == cols_i, q, 0.0), axis=1,
                         keepdims=True)             # (C, 1)

        mean1 = s * inv_p
        var1 = diag_q * inv_p - mean1 * mean1
        a1 = gamma_w * jax.lax.rsqrt(var1 + EPS)    # BN1 scale
        b1 = beta_w - a1 * mean1                    # BN1 shift

        # z = M @ wy + c with M = w_c diag(a1), c = w_c @ b1 (b_c cancelled).
        wc = wc_ref[...]
        m_s = jnp.dot(wc, a1 * s, preferred_element_type=jnp.float32)    # M @ S
        cvec = jnp.dot(wc, b1, preferred_element_type=jnp.float32)       # (C, 1)
        u = jnp.dot(wc, a1 * q, preferred_element_type=jnp.float32)      # M @ Q
        diag2 = jnp.dot(u * wc, a1, preferred_element_type=jnp.float32)  # diag(M Q M^T)

        mean2 = m_s * inv_p + cvec
        var2 = diag2 * inv_p - (m_s * inv_p) ** 2
        a2 = gamma_c * jax.lax.rsqrt(var2 + EPS)    # BN2 scale
        b2 = beta_c - a2 * mean2                    # BN2 shift

        coef_ref[:, 0:1] = a1
        coef_ref[:, 1:2] = b1
        coef_ref[:, 2:3] = a2
        coef_ref[:, 3:4] = b2

    @pl.when(ph == 1)
    def _phase1():
        a1 = coef_ref[:, 0:1]
        b1 = coef_ref[:, 1:2]
        a2 = coef_ref[:, 2:3]
        b2 = coef_ref[:, 3:4]
        gate1 = a1 * wy + b1                                        # BN1 applied
        z = jnp.dot(wc_ref[...].astype(mxu_dtype), gate1.astype(mxu_dtype),
                    preferred_element_type=jnp.float32)             # combine_gates conv
        out_ref[0] = jnp.maximum(a2 * z + b2, 0.0)                  # BN2 + ReLU
        attn_ref[0] = sigm


def multi_attention_block(x_nchw, g_nchw, params, *, tile_hw=None,
                          matmul_dtype=jnp.float32):
    B, C, H, W = x_nchw.shape
    Cg = g_nchw.shape[1]
    Ci = params["w_theta"].shape[0]
    HW = H * W
    P = B * HW

    if tile_hw is None:
        tile_hw = HW
        if HW % 128 == 0:
            for cand in (2048, 1024, 512, 256, 128):
                if HW % cand == 0:
                    tile_hw = cand
                    break
    if HW % tile_hw != 0 or (tile_hw != HW and tile_hw % 128 != 0):
        raise ValueError(f"tile_hw={tile_hw} must divide H*W={HW} and be a "
                         f"multiple of 128 (or equal H*W)")
    n_t = HW // tile_hw

    # Free reshapes only -- no transpose / concat glue.
    x3 = x_nchw.reshape(B, C, HW)
    g3 = g_nchw.reshape(B, Cg, HW)

    w_th = params["w_theta"]                       # (Ci, C)
    w_ph = params["w_phi"]                         # (Ci, Cg)
    w_w = params["w_W"]                            # (C, C)
    w_c = params["w_c"]                            # (C, C)

    rows = ((max(C, Ci) + 7) // 8) * 8
    pvec = jnp.zeros((rows, 8), jnp.float32)
    pvec = pvec.at[0:Ci, 0].set(params["b_phi"])
    pvec = pvec.at[0:Ci, 1].set(params["w_psi"])
    pvec = pvec.at[0:C, 2].set(params["gamma_W"])
    pvec = pvec.at[0:C, 3].set(params["beta_W"])
    pvec = pvec.at[0:C, 4].set(params["gamma_c"])
    pvec = pvec.at[0:C, 5].set(params["beta_c"])
    pvec = pvec.at[0, 6].set(params["b_psi"])
    # b_W / b_c intentionally NOT passed (cancelled by the train-mode BNs).

    kernel = functools.partial(_mab_kernel, c_in=C, c_inter=Ci,
                               p_total=P, mxu_dtype=matmul_dtype)

    flops = int(P * (4 * Ci * (C + Cg) + 8 * C * C))
    bytes_accessed = int(4 * (2 * (C + Cg) * P + (C + 1) * P
                              + w_th.size + w_ph.size + 2 * w_w.size + pvec.size))

    out3, attn3 = pl.pallas_call(
        kernel,
        out_shape=(jax.ShapeDtypeStruct((B, C, HW), jnp.float32),
                   jax.ShapeDtypeStruct((B, 1, HW), jnp.float32)),
        grid=(2, B, n_t),
        in_specs=[
            pl.BlockSpec((1, C, tile_hw), lambda ph, b, t: (b, 0, t)),
            pl.BlockSpec((1, Cg, tile_hw), lambda ph, b, t: (b, 0, t)),
            pl.BlockSpec((Ci, C), lambda ph, b, t: (0, 0)),
            pl.BlockSpec((Ci, Cg), lambda ph, b, t: (0, 0)),
            pl.BlockSpec((C, C), lambda ph, b, t: (0, 0)),
            pl.BlockSpec((C, C), lambda ph, b, t: (0, 0)),
            pl.BlockSpec((rows, 8), lambda ph, b, t: (0, 0)),
        ],
        out_specs=(
            # Outputs only map to real tiles during the write phase, so no
            # garbage / redundant writebacks happen during the stats phase.
            pl.BlockSpec((1, C, tile_hw),
                         lambda ph, b, t: (jnp.where(ph == 1, b, 0), 0,
                                           jnp.where(ph == 1, t, 0))),
            pl.BlockSpec((1, 1, tile_hw),
                         lambda ph, b, t: (jnp.where(ph == 1, b, 0), 0,
                                           jnp.where(ph == 1, t, 0))),
        ),
        scratch_shapes=[pltpu.VMEM((C, 1), jnp.float32),   # S  = sum(wy)
                        pltpu.VMEM((C, C), jnp.float32),   # Q  = wy wy^T
                        pltpu.VMEM((C, 4), jnp.float32)],  # folded BN coeffs
        compiler_params=pltpu.CompilerParams(
            dimension_semantics=("arbitrary", "arbitrary", "arbitrary")),
        cost_estimate=pl.CostEstimate(flops=flops, transcendentals=2 * P,
                                      bytes_accessed=bytes_accessed),
    )(x3, g3, w_th, w_ph, w_w, w_c, pvec)

    return out3.reshape(B, C, H, W), attn3.reshape(B, 1, H, W)


def _reference(x_nchw, g_nchw, p):
    """Pure-JAX reference of the same PyTorch forward (keeps b_W / b_c)."""
    B, C, H, W = x_nchw.shape
    Cg = g_nchw.shape[1]
    P = B * H * W
    x = jnp.transpose(x_nchw, (1, 0, 2, 3)).reshape(C, P)
    g = jnp.transpose(g_nchw, (1, 0, 2, 3)).reshape(Cg, P)
    theta = p["w_theta"] @ x
    phi = p["w_phi"] @ g + p["b_phi"][:, None]
    f = jnp.maximum(theta + phi, 0.0)
    psi = p["w_psi"][None, :] @ f + p["b_psi"]
    sigm = 1.0 / (1.0 + jnp.exp(-psi))
    y = sigm * x
    wy = p["w_W"] @ y + p["b_W"][:, None]
    mu, var = jnp.mean(wy, 1, keepdims=True), jnp.var(wy, 1, keepdims=True)
    gate1 = p["gamma_W"][:, None] * (wy - mu) * jax.lax.rsqrt(var + EPS) + p["beta_W"][:, None]
    z = p["w_c"] @ gate1 + p["b_c"][:, None]
    mu2, var2 = jnp.mean(z, 1, keepdims=True), jnp.var(z, 1, keepdims=True)
    out = jnp.maximum(
        p["gamma_c"][:, None] * (z - mu2) * jax.lax.rsqrt(var2 + EPS) + p["beta_c"][:, None], 0.0)
    out = jnp.transpose(out.reshape(C, B, H, W), (1, 0, 2, 3))
    attn = jnp.transpose(sigm.reshape(1, B, H, W), (1, 0, 2, 3))
    return out, attn


def make_params(key, in_size, gate_size, inter_size):
    ks = jax.random.split(key, 13)
    n = functools.partial(jax.random.normal, dtype=jnp.float32)
    # weights stored channel-major (C_out, C_in) = squeezed 1x1 conv weights
    return {
        "w_theta": 0.1 * n(ks[0], (inter_size, in_size)),    # theta conv (no bias)
        "w_phi":   0.1 * n(ks[1], (inter_size, gate_size)),  # phi conv
        "b_phi":   0.1 * n(ks[2], (inter_size,)),
        "w_psi":   0.1 * n(ks[3], (inter_size,)),            # psi conv (1 out channel)
        "b_psi":   0.1 * n(ks[4], ()),
        "w_W":     0.1 * n(ks[5], (in_size, in_size)),       # W conv
        "b_W":     0.1 * n(ks[6], (in_size,)),
        "gamma_W": 1.0 + 0.1 * n(ks[7], (in_size,)),         # BN affine
        "beta_W":  0.1 * n(ks[8], (in_size,)),
        "w_c":     0.1 * n(ks[9], (in_size, in_size)),       # combine_gates conv
        "b_c":     0.1 * n(ks[10], (in_size,)),
        "gamma_c": 1.0 + 0.1 * n(ks[11], (in_size,)),
        "beta_c":  0.1 * n(ks[12], (in_size,)),
    }


if __name__ == "__main__":
    B, C_in, C_gate, C_inter, H, W = 2, 32, 32, 16, 16, 16

    key = jax.random.PRNGKey(0)
    kx, kg, kp = jax.random.split(key, 3)
    x = jax.random.normal(kx, (B, C_in, H, W), jnp.float32)          # input (NCHW)
    gating = jax.random.normal(kg, (B, C_gate, H, W), jnp.float32)   # gating_signal
    params = make_params(kp, C_in, C_gate, C_inter)

    # tile_hw=128 -> grid (2 phases, 2 batch, 2 spatial tiles): exercises the
    # tiled partial-sum BatchNorm path rather than the single-block case.
    out, attn = multi_attention_block(x, gating, params, tile_hw=128)
    out, attn = jax.block_until_ready(out), jax.block_until_ready(attn)

    ref_out, ref_attn = _reference(x, gating, params)
    assert out.shape == (B, C_in, H, W) and attn.shape == (B, 1, H, W)
    assert jnp.allclose(attn, ref_attn, atol=1e-5, rtol=1e-5), \
        float(jnp.max(jnp.abs(attn - ref_attn)))
    assert jnp.allclose(out, ref_out, atol=1e-4, rtol=1e-4), \
        float(jnp.max(jnp.abs(out - ref_out)))

    print("KERNEL_OK")
</pallas_src>

<mosaic_0001>
module attributes {stable_mosaic.version = 11 : i64} {
  func.func @_mab_kernel(%arg0: i32, %arg1: i32, %arg2: i32, %arg3: memref<1x32x128xf32, #tpu.memory_space<vmem>>, %arg4: memref<1x32x128xf32, #tpu.memory_space<vmem>>, %arg5: memref<16x32xf32, #tpu.memory_space<vmem>>, %arg6: memref<16x32xf32, #tpu.memory_space<vmem>>, %arg7: memref<32x32xf32, #tpu.memory_space<vmem>>, %arg8: memref<32x32xf32, #tpu.memory_space<vmem>>, %arg9: memref<32x8xf32, #tpu.memory_space<vmem>>, %arg10: memref<1x32x128xf32, #tpu.memory_space<vmem>>, %arg11: memref<1x1x128xf32, #tpu.memory_space<vmem>>, %arg12: memref<32x1xf32, #tpu.memory_space<vmem>>, %arg13: memref<32x32xf32, #tpu.memory_space<vmem>>, %arg14: memref<32x4xf32, #tpu.memory_space<vmem>>) attributes {dimension_semantics = [#tpu.dimension_semantics<arbitrary>, #tpu.dimension_semantics<arbitrary>, #tpu.dimension_semantics<arbitrary>], iteration_bounds = array<i64: 2, 2, 2>, scalar_prefetch = 0 : i64, scratch_operands = 3 : i64, tpu.core_type = #tpu.core_type<tc>, window_params = [{transform_indices = @transform_0, window_bounds = array<i64: 1, 32, 128>}, {transform_indices = @transform_1, window_bounds = array<i64: 1, 32, 128>}, {pipeline_mode = #tpu.pipeline_mode<synchronous>, transform_indices = @transform_2, window_bounds = array<i64: 16, 32>}, {pipeline_mode = #tpu.pipeline_mode<synchronous>, transform_indices = @transform_3, window_bounds = array<i64: 16, 32>}, {pipeline_mode = #tpu.pipeline_mode<synchronous>, transform_indices = @transform_4, window_bounds = array<i64: 32, 32>}, {pipeline_mode = #tpu.pipeline_mode<synchronous>, transform_indices = @transform_5, window_bounds = array<i64: 32, 32>}, {pipeline_mode = #tpu.pipeline_mode<synchronous>, transform_indices = @transform_6, window_bounds = array<i64: 32, 8>}, {transform_indices = @transform_7, window_bounds = array<i64: 1, 32, 128>}, {transform_indices = @transform_8, window_bounds = array<i64: 1, 1, 128>}]} {
    %c0_i32 = arith.constant 0 : i32
    %0 = arith.cmpi eq, %arg1, %c0_i32 : i32
    %c0_i32_0 = arith.constant 0 : i32
    %1 = arith.cmpi eq, %arg2, %c0_i32_0 : i32
    %2 = arith.andi %0, %1 : i1
    %c0_i32_1 = arith.constant 0 : i32
    %3 = arith.cmpi eq, %arg0, %c0_i32_1 : i32
    %4 = arith.andi %3, %2 : i1
    %5 = arith.extui %4 : i1 to i32
    %c0_i32_2 = arith.constant 0 : i32
    %6 = arith.cmpi ne, %5, %c0_i32_2 : i32
    scf.if %6 {
      %cst_29 = arith.constant 0.000000e+00 : f32
      %49 = vector.broadcast %cst_29 : f32 to vector<32x1xf32>
      %c0_30 = arith.constant 0 : index
      %c0_31 = arith.constant 0 : index
      %50 = vector.load %arg12[%c0_30, %c0_31] : memref<32x1xf32, #tpu.memory_space<vmem>>, vector<32x1xf32>
      tpu.vector_store %arg12[%c0_30, %c0_31], %49 {strides = array<i32>} : memref<32x1xf32, #tpu.memory_space<vmem>>, vector<32x1xf32>,
      %cst_32 = arith.constant 0.000000e+00 : f32
      %51 = vector.broadcast %cst_32 : f32 to vector<32x32xf32>
      %c0_33 = arith.constant 0 : index
      %c0_34 = arith.constant 0 : index
      %52 = vector.load %arg13[%c0_33, %c0_34] : memref<32x32xf32, #tpu.memory_space<vmem>>, vector<32x32xf32>
      tpu.vector_store %arg13[%c0_33, %c0_34], %51 {strides = array<i32>} : memref<32x32xf32, #tpu.memory_space<vmem>>, vector<32x32xf32>,
    } else {
    }
    %c0 = arith.constant 0 : index
    %c0_3 = arith.constant 0 : index
    %c0_4 = arith.constant 0 : index
    %7 = vector.load %arg3[%c0, %c0_3, %c0_4] : memref<1x32x128xf32, #tpu.memory_space<vmem>>, vector<1x32x128xf32>
    %8 = vector.shape_cast %7 : vector<1x32x128xf32> to vector<32x128xf32>
    %c0_5 = arith.constant 0 : index
    %c0_6 = arith.constant 0 : index
    %c0_7 = arith.constant 0 : index
    %9 = vector.load %arg4[%c0_5, %c0_6, %c0_7] : memref<1x32x128xf32, #tpu.memory_space<vmem>>, vector<1x32x128xf32>
    %10 = vector.shape_cast %9 : vector<1x32x128xf32> to vector<32x128xf32>
    %c0_8 = arith.constant 0 : index
    %c0_9 = arith.constant 0 : index
    %11 = vector.load %arg9[%c0_8, %c0_9] : memref<32x8xf32, #tpu.memory_space<vmem>>, vector<16x1xf32>
    %c0_10 = arith.constant 0 : index
    %c1 = arith.constant 1 : index
    %12 = vector.load %arg9[%c0_10, %c1] : memref<32x8xf32, #tpu.memory_space<vmem>>, vector<16x1xf32>
    %c0_11 = arith.constant 0 : index
    %c6 = arith.constant 6 : index
    %13 = vector.load %arg9[%c0_11, %c6] : memref<32x8xf32, #tpu.memory_space<vmem>>, vector<1x1xf32>
    %c0_12 = arith.constant 0 : index
    %c0_13 = arith.constant 0 : index
    %14 = vector.load %arg5[%c0_12, %c0_13] : memref<16x32xf32, #tpu.memory_space<vmem>>, vector<16x32xf32>
    %cst = arith.constant dense<0.000000e+00> : vector<16x128xf32>
    %15 = tpu.matmul %14, %8, %cst {dimension_numbers = #tpu.dot_dimension_numbers<[1], [0], [0], [1], [0, 0, 1, 1], [], []>} : vector<16x32xf32>, vector<32x128xf32>, vector<16x128xf32> -> vector<16x128xf32>
    %c0_14 = arith.constant 0 : index
    %c0_15 = arith.constant 0 : index
    %16 = vector.load %arg6[%c0_14, %c0_15] : memref<16x32xf32, #tpu.memory_space<vmem>>, vector<16x32xf32>
    %cst_16 = arith.constant dense<0.000000e+00> : vector<16x128xf32>
    %17 = tpu.matmul %16, %10, %cst_16 {dimension_numbers = #tpu.dot_dimension_numbers<[1], [0], [0], [1], [0, 0, 1, 1], [], []>} : vector<16x32xf32>, vector<32x128xf32>, vector<16x128xf32> -> vector<16x128xf32>
    %18 = arith.addf %15, %17 : vector<16x128xf32>
    %19 = vector.broadcast %11 : vector<16x1xf32> to vector<16x128xf32>
    %20 = arith.addf %18, %19 : vector<16x128xf32>
    %cst_17 = arith.constant 0.000000e+00 : f32
    %21 = vector.broadcast %cst_17 : f32 to vector<16x128xf32>
    %22 = arith.maximumf %20, %21 : vector<16x128xf32>
    %23 = vector.broadcast %12 : vector<16x1xf32> to vector<16x128xf32>
    %24 = arith.mulf %22, %23 : vector<16x128xf32>
    %cst_18 = arith.constant dense<0.000000e+00> : vector<128xf32>
    %25 = vector.multi_reduction <add>, %24, %cst_18 [0] : vector<16x128xf32> to vector<128xf32>
    %26 = vector.shape_cast %25 : vector<128xf32> to vector<1x128xf32>
    %27 = vector.broadcast %13 : vector<1x1xf32> to vector<1x128xf32>
    %28 = arith.addf %26, %27 : vector<1x128xf32>
    %cst_19 = arith.constant 0.000000e+00 : f32
    %29 = vector.broadcast %cst_19 : f32 to vector<1x128xf32>
    %30 = arith.subf %29, %28 : vector<1x128xf32>
    %31 = math.exp %30 : vector<1x128xf32>
    %cst_20 = arith.constant 1.000000e+00 : f32
    %32 = vector.broadcast %cst_20 : f32 to vector<1x128xf32>
    %33 = arith.addf %32, %31 : vector<1x128xf32>
    %34 = tpu.reciprocal %33 : vector<1x128xf32> -> vector<1x128xf32>
    %35 = vector.broadcast %34 : vector<1x128xf32> to vector<32x128xf32>
    %36 = arith.mulf %35, %8 : vector<32x128xf32>
    %c0_21 = arith.constant 0 : index
    %c0_22 = arith.constant 0 : index
    %37 = vector.load %arg7[%c0_21, %c0_22] : memref<32x32xf32, #tpu.memory_space<vmem>>, vector<32x32xf32>
    %cst_23 = arith.constant dense<0.000000e+00> : vector<32x128xf32>
    %38 = tpu.matmul %37, %36, %cst_23 {dimension_numbers = #tpu.dot_dimension_numbers<[1], [0], [0], [1], [0, 0, 1, 1], [], []>} : vector<32x32xf32>, vector<32x128xf32>, vector<32x128xf32> -> vector<32x128xf32>
    %c0_i32_24 = arith.constant 0 : i32
    %39 = arith.cmpi eq, %arg0, %c0_i32_24 : i32
    %40 = arith.extui %39 : i1 to i32
    %c0_i32_25 = arith.constant 0 : i32
    %41 = arith.cmpi ne, %40, %c0_i32_25 : i32
    scf.if %41 {
      %c0_29 = arith.constant 0 : index
      %c0_30 = arith.constant 0 : index
      %49 = vector.load %arg12[%c0_29, %c0_30] : memref<32x1xf32, #tpu.memory_space<vmem>>, vector<32x1xf32>
      %cst_31 = arith.constant dense<0.000000e+00> : vector<32xf32>
      %50 = vector.multi_reduction <add>, %38, %cst_31 [1] : vector<32x128xf32> to vector<32xf32>
      %51 = vector.shape_cast %50 : vector<32xf32> to vector<32x1xf32>
      %52 = arith.addf %49, %51 : vector<32x1xf32>
      %c0_32 = arith.constant 0 : index
      %c0_33 = arith.constant 0 : index
      %53 = vector.load %arg12[%c0_32, %c0_33] : memref<32x1xf32, #tpu.memory_space<vmem>>, vector<32x1xf32>
      tpu.vector_store %arg12[%c0_32, %c0_33], %52 {strides = array<i32>} : memref<32x1xf32, #tpu.memory_space<vmem>>, vector<32x1xf32>,
      %c0_34 = arith.constant 0 : index
      %c0_35 = arith.constant 0 : index
      %54 = vector.load %arg13[%c0_34, %c0_35] : memref<32x32xf32, #tpu.memory_space<vmem>>, vector<32x32xf32>
      %cst_36 = arith.constant dense<0.000000e+00> : vector<32x32xf32>
      %55 = tpu.matmul %38, %38, %cst_36 {dimension_numbers = #tpu.dot_dimension_numbers<[1], [1], [0], [0], [0, 0, 1, 0], [], []>} : vector<32x128xf32>, vector<32x128xf32>, vector<32x32xf32> -> vector<32x32xf32>
      %56 = arith.addf %54, %55 : vector<32x32xf32>
      %c0_37 = arith.constant 0 : index
      %c0_38 = arith.constant 0 : index
      %57 = vector.load %arg13[%c0_37, %c0_38] : memref<32x32xf32, #tpu.memory_space<vmem>>, vector<32x32xf32>
      tpu.vector_store %arg13[%c0_37, %c0_38], %56 {strides = array<i32>} : memref<32x32xf32, #tpu.memory_space<vmem>>, vector<32x32xf32>,
    } else {
    }
    %c1_i32 = arith.constant 1 : i32
    %42 = arith.cmpi eq, %arg0, %c1_i32 : i32
    %43 = arith.andi %42, %2 : i1
    %44 = arith.extui %43 : i1 to i32
    %c0_i32_26 = arith.constant 0 : i32
    %45 = arith.cmpi ne, %44, %c0_i32_26 : i32
    scf.if %45 {
      %c0_29 = arith.constant 0 : index
      %c0_30 = arith.constant 0 : index
      %49 = vector.load %arg12[%c0_29, %c0_30] : memref<32x1xf32, #tpu.memory_space<vmem>>, vector<32x1xf32>
      %c0_31 = arith.constant 0 : index
      %c0_32 = arith.constant 0 : index
      %50 = vector.load %arg13[%c0_31, %c0_32] : memref<32x32xf32, #tpu.memory_space<vmem>>, vector<32x32xf32>
      %c0_33 = arith.constant 0 : index
      %c2 = arith.constant 2 : index
      %51 = vector.load %arg9[%c0_33, %c2] : memref<32x8xf32, #tpu.memory_space<vmem>>, vector<32x1xf32>
      %c0_34 = arith.constant 0 : index
      %c3 = arith.constant 3 : index
      %52 = vector.load %arg9[%c0_34, %c3] : memref<32x8xf32, #tpu.memory_space<vmem>>, vector<32x1xf32>
      %c0_35 = arith.constant 0 : index
      %c4 = arith.constant 4 : index
      %53 = vector.load %arg9[%c0_35, %c4] : memref<32x8xf32, #tpu.memory_space<vmem>>, vector<32x1xf32>
      %c0_36 = arith.constant 0 : index
      %c5 = arith.constant 5 : index
      %54 = vector.load %arg9[%c0_36, %c5] : memref<32x8xf32, #tpu.memory_space<vmem>>, vector<32x1xf32>
      %55 = tpu.iota {dimensions = array<i32: 0>} : vector<32x32xi32>
      %56 = tpu.iota {dimensions = array<i32: 1>} : vector<32x32xi32>
      %57 = arith.cmpi eq, %55, %56 : vector<32x32xi32>
      %cst_37 = arith.constant 0.000000e+00 : f32
      %58 = vector.broadcast %cst_37 : f32 to vector<32x32xf32>
      %59 = arith.select %57, %50, %58 : vector<32x32xi1>, vector<32x32xf32>
      %cst_38 = arith.constant dense<0.000000e+00> : vector<32xf32>
      %60 = vector.multi_reduction <add>, %59, %cst_38 [1] : vector<32x32xf32> to vector<32xf32>
      %61 = vector.shape_cast %60 : vector<32xf32> to vector<32x1xf32>
      %cst_39 = arith.constant 0.001953125 : f32
      %62 = vector.broadcast %cst_39 : f32 to vector<32x1xf32>
      %63 = arith.mulf %49, %62 : vector<32x1xf32>
      %cst_40 = arith.constant 0.001953125 : f32
      %64 = vector.broadcast %cst_40 : f32 to vector<32x1xf32>
      %65 = arith.mulf %61, %64 : vector<32x1xf32>
      %66 = arith.mulf %63, %63 : vector<32x1xf32>
      %67 = arith.subf %65, %66 : vector<32x1xf32>
      %cst_41 = arith.constant 9.99999974E-6 : f32
      %68 = vector.broadcast %cst_41 : f32 to vector<32x1xf32>
      %69 = arith.addf %67, %68 : vector<32x1xf32>
      %70 = math.rsqrt %69 : vector<32x1xf32>
      %71 = arith.mulf %51, %70 : vector<32x1xf32>
      %72 = arith.mulf %71, %63 : vector<32x1xf32>
      %73 = arith.subf %52, %72 : vector<32x1xf32>
      %c0_42 = arith.constant 0 : index
      %c0_43 = arith.constant 0 : index
      %74 = vector.load %arg8[%c0_42, %c0_43] : memref<32x32xf32, #tpu.memory_space<vmem>>, vector<32x32xf32>
      %75 = arith.mulf %71, %49 : vector<32x1xf32>
      %cst_44 = arith.constant dense<0.000000e+00> : vector<32x1xf32>
      %76 = tpu.matmul %74, %75, %cst_44 {dimension_numbers = #tpu.dot_dimension_numbers<[1], [0], [0], [1], [0, 0, 1, 1], [], []>} : vector<32x32xf32>, vector<32x1xf32>, vector<32x1xf32> -> vector<32x1xf32>
      %cst_45 = arith.constant dense<0.000000e+00> : vector<32x1xf32>
      %77 = tpu.matmul %74, %73, %cst_45 {dimension_numbers = #tpu.dot_dimension_numbers<[1], [0], [0], [1], [0, 0, 1, 1], [], []>} : vector<32x32xf32>, vector<32x1xf32>, vector<32x1xf32> -> vector<32x1xf32>
      %78 = vector.broadcast %71 : vector<32x1xf32> to vector<32x32xf32>
      %79 = arith.mulf %78, %50 : vector<32x32xf32>
      %cst_46 = arith.constant dense<0.000000e+00> : vector<32x32xf32>
      %80 = tpu.matmul %74, %79, %cst_46 {dimension_numbers = #tpu.dot_dimension_numbers<[1], [0], [0], [1], [0, 0, 1, 1], [], []>} : vector<32x32xf32>, vector<32x32xf32>, vector<32x32xf32> -> vector<32x32xf32>
      %81 = arith.mulf %80, %74 : vector<32x32xf32>
      %cst_47 = arith.constant dense<0.000000e+00> : vector<32x1xf32>
      %82 = tpu.matmul %81, %71, %cst_47 {dimension_numbers = #tpu.dot_dimension_numbers<[1], [0], [0], [1], [0, 0, 1, 1], [], []>} : vector<32x32xf32>, vector<32x1xf32>, vector<32x1xf32> -> vector<32x1xf32>
      %cst_48 = arith.constant 0.001953125 : f32
      %83 = vector.broadcast %cst_48 : f32 to vector<32x1xf32>
      %84 = arith.mulf %76, %83 : vector<32x1xf32>
      %85 = arith.addf %84, %77 : vector<32x1xf32>
      %cst_49 = arith.constant 0.001953125 : f32
      %86 = vector.broadcast %cst_49 : f32 to vector<32x1xf32>
      %87 = arith.mulf %82, %86 : vector<32x1xf32>
      %cst_50 = arith.constant 0.001953125 : f32
      %88 = vector.broadcast %cst_50 : f32 to vector<32x1xf32>
      %89 = arith.mulf %76, %88 : vector<32x1xf32>
      %90 = arith.mulf %89, %89 : vector<32x1xf32>
      %91 = arith.subf %87, %90 : vector<32x1xf32>
      %cst_51 = arith.constant 9.99999974E-6 : f32
      %92 = vector.broadcast %cst_51 : f32 to vector<32x1xf32>
      %93 = arith.addf %91, %92 : vector<32x1xf32>
      %94 = math.rsqrt %93 : vector<32x1xf32>
      %95 = arith.mulf %53, %94 : vector<32x1xf32>
      %96 = arith.mulf %95, %85 : vector<32x1xf32>
      %97 = arith.subf %54, %96 : vector<32x1xf32>
      %c0_52 = arith.constant 0 : index
      %c0_53 = arith.constant 0 : index
      %98 = vector.load %arg14[%c0_52, %c0_53] : memref<32x4xf32, #tpu.memory_space<vmem>>, vector<32x1xf32>
      tpu.vector_store %arg14[%c0_52, %c0_53], %71 {strides = array<i32>} : memref<32x4xf32, #tpu.memory_space<vmem>>, vector<32x1xf32>,
      %c0_54 = arith.constant 0 : index
      %c1_55 = arith.constant 1 : index
      %99 = vector.load %arg14[%c0_54, %c1_55] : memref<32x4xf32, #tpu.memory_space<vmem>>, vector<32x1xf32>
      tpu.vector_store %arg14[%c0_54, %c1_55], %73 {strides = array<i32>} : memref<32x4xf32, #tpu.memory_space<vmem>>, vector<32x1xf32>,
      %c0_56 = arith.constant 0 : index
      %c2_57 = arith.constant 2 : index
      %100 = vector.load %arg14[%c0_56, %c2_57] : memref<32x4xf32, #tpu.memory_space<vmem>>, vector<32x1xf32>
      tpu.vector_store %arg14[%c0_56, %c2_57], %95 {strides = array<i32>} : memref<32x4xf32, #tpu.memory_space<vmem>>, vector<32x1xf32>,
      %c0_58 = arith.constant 0 : index
      %c3_59 = arith.constant 3 : index
      %101 = vector.load %arg14[%c0_58, %c3_59] : memref<32x4xf32, #tpu.memory_space<vmem>>, vector<32x1xf32>
      tpu.vector_store %arg14[%c0_58, %c3_59], %97 {strides = array<i32>} : memref<32x4xf32, #tpu.memory_space<vmem>>, vector<32x1xf32>,
    } else {
    }
    %c1_i32_27 = arith.constant 1 : i32
    %46 = arith.cmpi eq, %arg0, %c1_i32_27 : i32
    %47 = arith.extui %46 : i1 to i32
    %c0_i32_28 = arith.constant 0 : i32
    %48 = arith.cmpi ne, %47, %c0_i32_28 : i32
    scf.if %48 {
      %c0_29 = arith.constant 0 : index
      %c0_30 = arith.constant 0 : index
      %49 = vector.load %arg14[%c0_29, %c0_30] : memref<32x4xf32, #tpu.memory_space<vmem>>, vector<32x1xf32>
      %c0_31 = arith.constant 0 : index
      %c1_32 = arith.constant 1 : index
      %50 = vector.load %arg14[%c0_31, %c1_32] : memref<32x4xf32, #tpu.memory_space<vmem>>, vector<32x1xf32>
      %c0_33 = arith.constant 0 : index
      %c2 = arith.constant 2 : index
      %51 = vector.load %arg14[%c0_33, %c2] : memref<32x4xf32, #tpu.memory_space<vmem>>, vector<32x1xf32>
      %c0_34 = arith.constant 0 : index
      %c3 = arith.constant 3 : index
      %52 = vector.load %arg14[%c0_34, %c3] : memref<32x4xf32, #tpu.memory_space<vmem>>, vector<32x1xf32>
      %53 = vector.broadcast %49 : vector<32x1xf32> to vector<32x128xf32>
      %54 = arith.mulf %53, %38 : vector<32x128xf32>
      %55 = vector.broadcast %50 : vector<32x1xf32> to vector<32x128xf32>
      %56 = arith.addf %54, %55 : vector<32x128xf32>
      %c0_35 = arith.constant 0 : index
      %c0_36 = arith.constant 0 : index
      %57 = vector.load %arg8[%c0_35, %c0_36] : memref<32x32xf32, #tpu.memory_space<vmem>>, vector<32x32xf32>
      %cst_37 = arith.constant dense<0.000000e+00> : vector<32x128xf32>
      %58 = tpu.matmul %57, %56, %cst_37 {dimension_numbers = #tpu.dot_dimension_numbers<[1], [0], [0], [1], [0, 0, 1, 1], [], []>} : vector<32x32xf32>, vector<32x128xf32>, vector<32x128xf32> -> vector<32x128xf32>
      %59 = vector.broadcast %51 : vector<32x1xf32> to vector<32x128xf32>
      %60 = arith.mulf %59, %58 : vector<32x128xf32>
      %61 = vector.broadcast %52 : vector<32x1xf32> to vector<32x128xf32>
      %62 = arith.addf %60, %61 : vector<32x128xf32>
      %cst_38 = arith.constant 0.000000e+00 : f32
      %63 = vector.broadcast %cst_38 : f32 to vector<32x128xf32>
      %64 = arith.maximumf %62, %63 : vector<32x128xf32>
      %c0_39 = arith.constant 0 : index
      %c0_40 = arith.constant 0 : index
      %c0_41 = arith.constant 0 : index
      %65 = vector.load %arg10[%c0_39, %c0_40, %c0_41] : memref<1x32x128xf32, #tpu.memory_space<vmem>>, vector<1x32x128xf32>
      %66 = vector.shape_cast %65 : vector<1x32x128xf32> to vector<32x128xf32>
      %67 = vector.shape_cast %64 : vector<32x128xf32> to vector<1x32x128xf32>
      tpu.vector_store %arg10[%c0_39, %c0_40, %c0_41], %67 {strides = array<i32>} : memref<1x32x128xf32, #tpu.memory_space<vmem>>, vector<1x32x128xf32>,
      %c0_42 = arith.constant 0 : index
      %c0_43 = arith.constant 0 : index
      %c0_44 = arith.constant 0 : index
      %68 = vector.load %arg11[%c0_42, %c0_43, %c0_44] : memref<1x1x128xf32, #tpu.memory_space<vmem>>, vector<1x1x128xf32>
      %69 = vector.shape_cast %68 : vector<1x1x128xf32> to vector<1x128xf32>
      %70 = vector.shape_cast %34 : vector<1x128xf32> to vector<1x1x128xf32>
      tpu.vector_store %arg11[%c0_42, %c0_43, %c0_44], %70 {strides = array<i32>} : memref<1x1x128xf32, #tpu.memory_space<vmem>>, vector<1x1x128xf32>,
    } else {
    }
    return
  }
  func.func @transform_0(%arg0: i32, %arg1: i32, %arg2: i32) -> (i32, i32, i32) {
    %c0_i32 = arith.constant 0 : i32
    %c0_i32_0 = arith.constant 0 : i32
    return %arg1, %c0_i32, %arg2 : i32, i32, i32
  }
  func.func @transform_1(%arg0: i32, %arg1: i32, %arg2: i32) -> (i32, i32, i32) {
    %c0_i32 = arith.constant 0 : i32
    %c0_i32_0 = arith.constant 0 : i32
    return %arg1, %c0_i32, %arg2 : i32, i32, i32
  }
  func.func @transform_2(%arg0: i32, %arg1: i32, %arg2: i32) -> (i32, i32) {
    %c0_i32 = arith.constant 0 : i32
    %c0_i32_0 = arith.constant 0 : i32
    %c0_i32_1 = arith.constant 0 : i32
    return %c0_i32, %c0_i32_0 : i32, i32
  }
  func.func @transform_3(%arg0: i32, %arg1: i32, %arg2: i32) -> (i32, i32) {
    %c0_i32 = arith.constant 0 : i32
    %c0_i32_0 = arith.constant 0 : i32
    %c0_i32_1 = arith.constant 0 : i32
    return %c0_i32, %c0_i32_0 : i32, i32
  }
  func.func @transform_4(%arg0: i32, %arg1: i32, %arg2: i32) -> (i32, i32) {
    %c0_i32 = arith.constant 0 : i32
    %c0_i32_0 = arith.constant 0 : i32
    %c0_i32_1 = arith.constant 0 : i32
    return %c0_i32, %c0_i32_0 : i32, i32
  }
  func.func @transform_5(%arg0: i32, %arg1: i32, %arg2: i32) -> (i32, i32) {
    %c0_i32 = arith.constant 0 : i32
    %c0_i32_0 = arith.constant 0 : i32
    %c0_i32_1 = arith.constant 0 : i32
    return %c0_i32, %c0_i32_0 : i32, i32
  }
  func.func @transform_6(%arg0: i32, %arg1: i32, %arg2: i32) -> (i32, i32) {
    %c0_i32 = arith.constant 0 : i32
    %c0_i32_0 = arith.constant 0 : i32
    %c0_i32_1 = arith.constant 0 : i32
    return %c0_i32, %c0_i32_0 : i32, i32
  }
  func.func @transform_7(%arg0: i32, %arg1: i32, %arg2: i32) -> (i32, i32, i32) {
    %c1_i32 = arith.constant 1 : i32
    %0 = arith.cmpi eq, %arg0, %c1_i32 : i32
    %c0_i32 = arith.constant 0 : i32
    %1 = arith.select %0, %arg1, %c0_i32 : i32
    %c1_i32_0 = arith.constant 1 : i32
    %2 = arith.cmpi eq, %arg0, %c1_i32_0 : i32
    %c0_i32_1 = arith.constant 0 : i32
    %3 = arith.select %2, %arg2, %c0_i32_1 : i32
    %c0_i32_2 = arith.constant 0 : i32
    %c0_i32_3 = arith.constant 0 : i32
    return %1, %c0_i32_2, %3 : i32, i32, i32
  }
  func.func @transform_8(%arg0: i32, %arg1: i32, %arg2: i32) -> (i32, i32, i32) {
    %c1_i32 = arith.constant 1 : i32
    %0 = arith.cmpi eq, %arg0, %c1_i32 : i32
    %c0_i32 = arith.constant 0 : i32
    %1 = arith.select %0, %arg1, %c0_i32 : i32
    %c1_i32_0 = arith.constant 1 : i32
    %2 = arith.cmpi eq, %arg0, %c1_i32_0 : i32
    %c0_i32_1 = arith.constant 0 : i32
    %3 = arith.select %2, %arg2, %c0_i32_1 : i32
    %c0_i32_2 = arith.constant 0 : i32
    %c0_i32_3 = arith.constant 0 : i32
    return %1, %c0_i32_2, %3 : i32, i32, i32
  }
}

</mosaic_0001>

<llo_original>
// kernel: tpu_custom_call.1
$region0: #{tpu_custom_call.1}
  #allocation0 [shape = 'u32[]', space=smem, size = 0x4, offset = 0x4, fixed_abs, tag = 'smem constant byte address 0x4 - core index']
  #allocation1 [shape = 'u32[144,128]{1,0:T(1,128)}', space=vmem, size = 0x12000, scoped, tag = 'internal scratch']
  #allocation2 [shape = 'f32[32,1]{1,0:T(8,128)}', space=vmem, size = 0x4000, scoped, tag = 'scratch operand']
  #allocation3 [shape = 'f32[32,32]{1,0:T(8,128)}', space=vmem, size = 0x4000, scoped, tag = 'scratch operand']
  #allocation4 [shape = 'f32[32,4]{1,0:T(8,128)}', space=vmem, size = 0x4000, scoped, tag = 'scratch operand']
  %s0 = inlined_call_operand.hbm [shape: f32[2,32,256], index: 0, kind: input, shape index: {}]
  %s1 = inlined_call_operand.hbm [shape: f32[2,32,256], index: 1, kind: input, shape index: {}]
  %s2 = inlined_call_operand.hbm [shape: f32[16,32], index: 2, kind: input, shape index: {}]
  %s3 = inlined_call_operand.hbm [shape: f32[16,32], index: 3, kind: input, shape index: {}]
  %s4 = inlined_call_operand.vmem [shape: f32[32,32], index: 4, kind: input, shape index: {}]
  %s5 = inlined_call_operand.hbm [shape: f32[32,32], index: 5, kind: input, shape index: {}]
  %s6 = inlined_call_operand.vmem [shape: f32[32,8], index: 6, kind: input, shape index: {}]
  %s7 = inlined_call_operand.hbm [shape: f32[2,32,256], index: 7, kind: output, shape index: {0}]
  %s8 = inlined_call_operand.hbm [shape: f32[2,1,256], index: 8, kind: output, shape index: {1}]
  %9 = xla_tuple %s7, %s8
  %s10 = sld [smem:[#allocation0]]
  $region105: #{tpu_custom_call.1} parent=0
    _
  %s12 = ssub.s32 1, %s10
  %s13 = scalar_select 0, %s12, %s10
  $region1: #{tpu_custom_call.1} parent=0
    #allocation5 [shape = 'u8[32768]{0}', space=vmem, size = 0x8000, scoped, tag = 'input window, operand 0']
    #allocation6 [shape = 's32[2]{0}', space=sflag, size = 0x8, scoped, tag = 'scoped memory for tpu_custom_call.1']
    #allocation7 [shape = 's32[2]{0}', space=sflag, size = 0x8, scoped, tag = 'scoped memory for tpu_custom_call.1']
    #allocation8 [shape = 'u8[32768]{0}', space=vmem, size = 0x8000, scoped, tag = 'input window, operand 1']
    #allocation9 [shape = 's32[2]{0}', space=sflag, size = 0x8, scoped, tag = 'scoped memory for tpu_custom_call.1']
    #allocation10 [shape = 'u8[8192]{0}', space=vmem, size = 0x2000, scoped, tag = 'input window, operand 2, single buffered']
    #allocation11 [shape = 'u8[8192]{0}', space=vmem, size = 0x2000, scoped, tag = 'input window, operand 3, single buffered']
    #allocation12 [shape = 's32[1]{0}', space=sflag, size = 0x4, scoped, tag = 'scoped memory for tpu_custom_call.1']
    #allocation13 [shape = 'u8[16384]{0}', space=vmem, size = 0x4000, scoped, tag = 'input window, operand 5, single buffered']
    #allocation14 [shape = 'u8[32768]{0}', space=vmem, size = 0x8000, scoped, tag = 'output window, operand 0']
    #allocation15 [shape = 'u8[1024]{0}', space=vmem, size = 0x400, scoped, tag = 'output window, operand 1']
    #allocation16 [shape = 's32[2]{0}', space=sflag, size = 0x8, scoped, tag = 'scoped memory for tpu_custom_call.1']
    %14 = vsyncpa [#allocation6], 0
    %s15 = scalar_lea.sflag [#allocation6], 1
    %16 = vsyncpa %s15, 0
    %17 = vsyncpa [#allocation9], 0
    %s18 = scalar_lea.sflag [#allocation9], 1
    %19 = vsyncpa %s18, 0
    %20 = vsyncpa [#allocation12], 0
    %21 = vsyncpa [#allocation7], 0
    %s22 = scalar_lea.sflag [#allocation7], 1
    %23 = vsyncpa %s22, 0
    %24 = vsyncpa [#allocation16], 0
    %s25 = scalar_lea.sflag [#allocation16], 1
    %26 = vsyncpa %s25, 0
    loop: start=0, step=1, limit=10
    $region2: #{tpu_custom_call.1} parent=1 // loop_pre_header
      _
    $region3: #{tpu_custom_call.1} parent=1 // loop_header
      %s28 = sphi 0, %s32
      %p29 = scmp.ge.s32.totalorder %s28, 10
      %s35 = sphi 0, %s54
      %s36 = sphi 0, %s50
      %s37 = sphi 0, %s46
      %s38 = sphi 0, %s35
      %s39 = sphi 0, %s36
      %s40 = sphi 0, %s37
      %s41 = sphi 0, %s38
      %s42 = sphi 0, %s39
      %s43 = sphi 0, %s40
      %s59 = sphi 0, %s61
      %s62 = sphi 0, %s59
      %s63 = sphi 0, %s62
      %s79 = sphi 0, %s63
      %s87 = sphi 0, %s89
      %s90 = sphi 0, %s87
      %s91 = sphi 0, %s90
      %s107 = sphi 0, %s91
      %s111 = sphi 0, %s111
      %s113 = sphi 0, %s111
      %s114 = sphi 0, %s113
      %s128 = sphi 0, %s114
      %s132 = sphi 0, %s132
      %s134 = sphi 0, %s132
      %s135 = sphi 0, %s134
      %s149 = sphi 0, %s135
      %s153 = sphi 0, %s153
      %s155 = sphi 0, %s153
      %s156 = sphi 0, %s155
      %s170 = sphi 0, %s156
      %s174 = sphi 0, %s174
      %s176 = sphi 0, %s174
      %s177 = sphi 0, %s176
      %s191 = sphi 0, %s177
      %s195 = sphi 0, %s195
      %s197 = sphi 0, %s195
      %s198 = sphi 0, %s197
      %s212 = sphi 0, %s198
      %s226 = sphi 0, %s228
      %s229 = sphi 0, %s226
      %s230 = sphi 0, %s229
      %s246 = sphi 0, %s230
      %s260 = sphi 0, %s262
      %s263 = sphi 0, %s260
      %s264 = sphi 0, %s263
      %s280 = sphi 0, %s264
    $region4: #{tpu_custom_call.1} parent=1 // loop_header_branch
      %31 = sbr.rel (%p29) target = $region8
    $region5: #{tpu_custom_call.1} parent=1 // loop_body
      %s33 = ssub.s32 %s28, 1
      %s34 = ssub.s32 %s28, 2
      %s44 = sadd.s32 1, %s37
      %p45 = scmp.ge.s32.totalorder %s44, 2
      %s46 = scalar_select %p45, 0, %s44
      %s47 = sadd.s32 1, %s36
      %s48 = scalar_select %p45, %s47, %s36
      %p49 = scmp.ge.s32.totalorder %s48, 2
      %s50 = scalar_select %p49, 0, %s48
      %s51 = sadd.s32 1, %s35
      %s52 = scalar_select %p49, %s51, %s35
      %p53 = scmp.ge.s32.totalorder %s52, 2
      %s54 = scalar_select %p53, 0, %s52
      %s55 = ssub.s32 %s36, %s50
      %s56 = ssub.s32 %s37, %s46
      %s57 = sor.u32 %s55, %s56
      %p58 = scmp.eq.s32.totalorder %s57, 0
      %s60 = sadd.s32 %s59, 1
      %s61 = scalar_select %p58, %s59, %s60
      %p64 = pneg %p58
      %p65 = scmp.eq.s32.totalorder %s28, 7
      %p66 = por %p64, %p65
      %p67 = scmp.ne.s32.totalorder %s59, %s62
      %p68 = scmp.eq.s32.totalorder %s28, 0
      %p69 = por %p67, %p68
      %p70 = scmp.ne.s32.totalorder %s59, %s62
      %p71 = scmp.eq.s32.totalorder %s33, 7
      %p72 = por %p70, %p71
      %p73 = scmp.ne.s32.totalorder %s62, %s63
      %p74 = scmp.eq.s32.totalorder %s33, 0
      %p75 = por %p73, %p74
      %p76 = scmp.ne.s32.totalorder %s62, %s63
      %p77 = scmp.eq.s32.totalorder %s34, 7
      %p78 = por %p76, %p77
      %p80 = scmp.ne.s32.totalorder %s63, %s79
      %p81 = scmp.eq.s32.totalorder %s34, 0
      %p82 = por %p80, %p81
      %s83 = ssub.s32 %s36, %s50
      %s84 = ssub.s32 %s37, %s46
      %s85 = sor.u32 %s83, %s84
      %p86 = scmp.eq.s32.totalorder %s85, 0
      %s88 = sadd.s32 %s87, 1
      %s89 = scalar_select %p86, %s87, %s88
      %p92 = pneg %p86
      %p93 = scmp.eq.s32.totalorder %s28, 7
      %p94 = por %p92, %p93
      %p95 = scmp.ne.s32.totalorder %s87, %s90
      %p96 = scmp.eq.s32.totalorder %s28, 0
      %p97 = por %p95, %p96
      %p98 = scmp.ne.s32.totalorder %s87, %s90
      %p99 = scmp.eq.s32.totalorder %s33, 7
      %p100 = por %p98, %p99
      %p101 = scmp.ne.s32.totalorder %s90, %s91
      %p102 = scmp.eq.s32.totalorder %s33, 0
      %p103 = por %p101, %p102
      %p104 = scmp.ne.s32.totalorder %s90, %s91
      %p105 = scmp.eq.s32.totalorder %s34, 7
      %p106 = por %p104, %p105
      %p108 = scmp.ne.s32.totalorder %s91, %s107
      %p109 = scmp.eq.s32.totalorder %s34, 0
      %p110 = por %p108, %p109
      %s112 = sadd.s32 %s111, 1
      %p115 = scmp.eq.s32.totalorder %s28, 7
      %p116 = scmp.ne.s32.totalorder %s111, %s113
      %p117 = scmp.eq.s32.totalorder %s28, 0
      %p118 = por %p116, %p117
      %p119 = scmp.ne.s32.totalorder %s111, %s113
      %p120 = scmp.eq.s32.totalorder %s33, 7
      %p121 = por %p119, %p120
      %p122 = scmp.ne.s32.totalorder %s113, %s114
      %p123 = scmp.eq.s32.totalorder %s33, 0
      %p124 = por %p122, %p123
      %p125 = scmp.ne.s32.totalorder %s113, %s114
      %p126 = scmp.eq.s32.totalorder %s34, 7
      %p127 = por %p125, %p126
      %p129 = scmp.ne.s32.totalorder %s114, %s128
      %p130 = scmp.eq.s32.totalorder %s34, 0
      %p131 = por %p129, %p130
      %s133 = sadd.s32 %s132, 1
      %p136 = scmp.eq.s32.totalorder %s28, 7
      %p137 = scmp.ne.s32.totalorder %s132, %s134
      %p138 = scmp.eq.s32.totalorder %s28, 0
      %p139 = por %p137, %p138
      %p140 = scmp.ne.s32.totalorder %s132, %s134
      %p141 = scmp.eq.s32.totalorder %s33, 7
      %p142 = por %p140, %p141
      %p143 = scmp.ne.s32.totalorder %s134, %s135
      %p144 = scmp.eq.s32.totalorder %s33, 0
      %p145 = por %p143, %p144
      %p146 = scmp.ne.s32.totalorder %s134, %s135
      %p147 = scmp.eq.s32.totalorder %s34, 7
      %p148 = por %p146, %p147
      %p150 = scmp.ne.s32.totalorder %s135, %s149
      %p151 = scmp.eq.s32.totalorder %s34, 0
      %p152 = por %p150, %p151
      %s154 = sadd.s32 %s153, 1
      %p157 = scmp.eq.s32.totalorder %s28, 7
      %p158 = scmp.ne.s32.totalorder %s153, %s155
      %p159 = scmp.eq.s32.totalorder %s28, 0
      %p160 = por %p158, %p159
      %p161 = scmp.ne.s32.totalorder %s153, %s155
      %p162 = scmp.eq.s32.totalorder %s33, 7
      %p163 = por %p161, %p162
      %p164 = scmp.ne.s32.totalorder %s155, %s156
      %p165 = scmp.eq.s32.totalorder %s33, 0
      %p166 = por %p164, %p165
      %p167 = scmp.ne.s32.totalorder %s155, %s156
      %p168 = scmp.eq.s32.totalorder %s34, 7
      %p169 = por %p167, %p168
      %p171 = scmp.ne.s32.totalorder %s156, %s170
      %p172 = scmp.eq.s32.totalorder %s34, 0
      %p173 = por %p171, %p172
      %s175 = sadd.s32 %s174, 1
      %p178 = scmp.eq.s32.totalorder %s28, 7
      %p179 = scmp.ne.s32.totalorder %s174, %s176
      %p180 = scmp.eq.s32.totalorder %s28, 0
      %p181 = por %p179, %p180
      %p182 = scmp.ne.s32.totalorder %s174, %s176
      %p183 = scmp.eq.s32.totalorder %s33, 7
      %p184 = por %p182, %p183
      %p185 = scmp.ne.s32.totalorder %s176, %s177
      %p186 = scmp.eq.s32.totalorder %s33, 0
      %p187 = por %p185, %p186
      %p188 = scmp.ne.s32.totalorder %s176, %s177
      %p189 = scmp.eq.s32.totalorder %s34, 7
      %p190 = por %p188, %p189
      %p192 = scmp.ne.s32.totalorder %s177, %s191
      %p193 = scmp.eq.s32.totalorder %s34, 0
      %p194 = por %p192, %p193
      %s196 = sadd.s32 %s195, 1
      %p199 = scmp.eq.s32.totalorder %s28, 7
      %p200 = scmp.ne.s32.totalorder %s195, %s197
      %p201 = scmp.eq.s32.totalorder %s28, 0
      %p202 = por %p200, %p201
      %p203 = scmp.ne.s32.totalorder %s195, %s197
      %p204 = scmp.eq.s32.totalorder %s33, 7
      %p205 = por %p203, %p204
      %p206 = scmp.ne.s32.totalorder %s197, %s198
      %p207 = scmp.eq.s32.totalorder %s33, 0
      %p208 = por %p206, %p207
      %p209 = scmp.ne.s32.totalorder %s197, %s198
      %p210 = scmp.eq.s32.totalorder %s34, 7
      %p211 = por %p209, %p210
      %p213 = scmp.ne.s32.totalorder %s198, %s212
      %p214 = scmp.eq.s32.totalorder %s34, 0
      %p215 = por %p213, %p214
      %p216 = scmp.eq.s32.totalorder %s35, 1
      %s217 = scalar_select %p216, %s36, 0
      %s218 = scalar_select %p216, %s37, 0
      %p219 = scmp.eq.s32.totalorder %s54, 1
      %s220 = scalar_select %p219, %s50, 0
      %s221 = scalar_select %p219, %s46, 0
      %s222 = ssub.s32 %s217, %s220
      %s223 = ssub.s32 %s218, %s221
      %s224 = sor.u32 %s222, %s223
      %p225 = scmp.eq.s32.totalorder %s224, 0
      %s227 = sadd.s32 %s226, 1
      %s228 = scalar_select %p225, %s226, %s227
      %p231 = pneg %p225
      %p232 = scmp.eq.s32.totalorder %s28, 7
      %p233 = por %p231, %p232
      %p234 = scmp.ne.s32.totalorder %s226, %s229
      %p235 = scmp.eq.s32.totalorder %s28, 0
      %p236 = por %p234, %p235
      %p237 = scmp.ne.s32.totalorder %s226, %s229
      %p238 = scmp.eq.s32.totalorder %s33, 7
      %p239 = por %p237, %p238
      %p240 = scmp.ne.s32.totalorder %s229, %s230
      %p241 = scmp.eq.s32.totalorder %s33, 0
      %p242 = por %p240, %p241
      %p243 = scmp.ne.s32.totalorder %s229, %s230
      %p244 = scmp.eq.s32.totalorder %s34, 7
      %p245 = por %p243, %p244
      %p247 = scmp.ne.s32.totalorder %s230, %s246
      %p248 = scmp.eq.s32.totalorder %s34, 0
      %p249 = por %p247, %p248
      %p250 = scmp.eq.s32.totalorder %s35, 1
      %s251 = scalar_select %p250, %s36, 0
      %s252 = scalar_select %p250, %s37, 0
      %p253 = scmp.eq.s32.totalorder %s54, 1
      %s254 = scalar_select %p253, %s50, 0
      %s255 = scalar_select %p253, %s46, 0
      %s256 = ssub.s32 %s251, %s254
      %s257 = ssub.s32 %s252, %s255
      %s258 = sor.u32 %s256, %s257
      %p259 = scmp.eq.s32.totalorder %s258, 0
      %s261 = sadd.s32 %s260, 1
      %s262 = scalar_select %p259, %s260, %s261
      %p265 = pneg %p259
      %p266 = scmp.eq.s32.totalorder %s28, 7
      %p267 = por %p265, %p266
      %p268 = scmp.ne.s32.totalorder %s260, %s263
      %p269 = scmp.eq.s32.totalorder %s28, 0
      %p270 = por %p268, %p269
      %p271 = scmp.ne.s32.totalorder %s260, %s263
      %p272 = scmp.eq.s32.totalorder %s33, 7
      %p273 = por %p271, %p272
      %p274 = scmp.ne.s32.totalorder %s263, %s264
      %p275 = scmp.eq.s32.totalorder %s33, 0
      %p276 = por %p274, %p275
      %p277 = scmp.ne.s32.totalorder %s263, %s264
      %p278 = scmp.eq.s32.totalorder %s34, 7
      %p279 = por %p277, %p278
      %p281 = scmp.ne.s32.totalorder %s264, %s280
      %p282 = scmp.eq.s32.totalorder %s34, 0
      %p283 = por %p281, %p282
      %p284 = scmp.le.s32.totalorder 1, %s28
      %p285 = scmp.lt.s32.totalorder %s28, 9
      %p286 = pnand %p284, %p285
      %p287 = pneg %p286
      // Predicated region
      $region9: #{tpu_custom_call.1} parent=5 // pred_check
        _
      $region10: #{tpu_custom_call.1} parent=5 // pred_check_branch
        %289 = sbr.rel (%p286) target = $region12
      $region11: #{tpu_custom_call.1} parent=5 // pred_region
        %s290 = ssub.s32 %s28, 1
        // Predicated region
        $region13: #{tpu_custom_call.1} parent=11 // pred_check
          %p291 = pneg %p124
        $region14: #{tpu_custom_call.1} parent=11 // pred_check_branch
          %293 = sbr.rel (%p291) target = $region16
        $region15: #{tpu_custom_call.1} parent=11 // pred_region
          %s295 = ssub.s32 256, 256
          %296 = vsyncadd [#allocation9], %s295
          %s297 = sshll.u32 [#allocation10], 4
          %s298 = int_to_ptr.vmem [resolvable:$true] %s297
          %303 = dma.hbm_to_vmem [thread:$0]  %s2, 256, %s298, [#allocation9], 128, 128, 8
        $region16: #{tpu_custom_call.1} parent=11 // pred_fallthru
          _
        // Predicated region
        $region17: #{tpu_custom_call.1} parent=11 // pred_check
          %p304 = pneg %p145
        $region18: #{tpu_custom_call.1} parent=11 // pred_check_branch
          %306 = sbr.rel (%p304) target = $region20
        $region19: #{tpu_custom_call.1} parent=11 // pred_region
          %s308 = ssub.s32 256, 256
          %309 = vsyncadd [#allocation12], %s308
          %s310 = sshll.u32 [#allocation11], 4
          %s311 = int_to_ptr.vmem [resolvable:$true] %s310
          %316 = dma.hbm_to_vmem [thread:$0]  %s3, 256, %s311, [#allocation12], 128, 128, 8
        $region20: #{tpu_custom_call.1} parent=11 // pred_fallthru
          _
        // Predicated region
        $region21: #{tpu_custom_call.1} parent=11 // pred_check
          %p317 = pneg %p166
        $region22: #{tpu_custom_call.1} parent=11 // pred_check_branch
          %319 = sbr.rel (%p317) target = $region24
        $region23: #{tpu_custom_call.1} parent=11 // pred_region
          _
        $region24: #{tpu_custom_call.1} parent=11 // pred_fallthru
          _
        // Predicated region
        $region25: #{tpu_custom_call.1} parent=11 // pred_check
          %p320 = pneg %p187
        $region26: #{tpu_custom_call.1} parent=11 // pred_check_branch
          %322 = sbr.rel (%p320) target = $region28
        $region27: #{tpu_custom_call.1} parent=11 // pred_region
          %s324 = ssub.s32 512, 512
          %325 = vsyncadd [#allocation12], %s324
          %s326 = sshll.u32 [#allocation13], 4
          %s327 = int_to_ptr.vmem [resolvable:$true] %s326
          %332 = dma.hbm_to_vmem [thread:$0]  %s5, 512, %s327, [#allocation12], 128, 128, 8
        $region28: #{tpu_custom_call.1} parent=11 // pred_fallthru
          _
        // Predicated region
        $region29: #{tpu_custom_call.1} parent=11 // pred_check
          %p333 = pneg %p208
        $region30: #{tpu_custom_call.1} parent=11 // pred_check_branch
          %335 = sbr.rel (%p333) target = $region32
        $region31: #{tpu_custom_call.1} parent=11 // pred_region
          _
        $region32: #{tpu_custom_call.1} parent=11 // pred_fallthru
          _
      $region12: #{tpu_custom_call.1} parent=5 // pred_fallthru
        _
      %p336 = scmp.lt.s32.totalorder %s28, 8
      // Predicated region
      $region33: #{tpu_custom_call.1} parent=5 // pred_check
        %p337 = pneg %p336
      $region34: #{tpu_custom_call.1} parent=5 // pred_check_branch
        %339 = sbr.rel (%p337) target = $region36
      $region35: #{tpu_custom_call.1} parent=5 // pred_region
        // Predicated region
        $region37: #{tpu_custom_call.1} parent=35 // pred_check
          %p340 = pneg %p69
        $region38: #{tpu_custom_call.1} parent=35 // pred_check_branch
          %342 = sbr.rel (%p340) target = $region40
        $region39: #{tpu_custom_call.1} parent=35 // pred_region
          %s343 = sand.u32 %s59, 1
          %s344 = scalar_lea.sflag [#allocation6], %s343
          %s345 = sand.u32 %s59, 1
          %s346 = smul.addr %s345, 32
          %s347 = scalar_lea.vmem [#allocation5], %s346
          %s349 = ssub.s32 512, 512
          %350 = vsyncadd %s344, %s349
          %s351 = smul.addr %s36, 8
          %s352 = sadd.s32 %s37, %s351
          %s353 = smul.addr %s352, 128
          %s354 = scalar_lea.hbm %s0, %s353
          %s355 = sshll.u32 %s347, 4
          %s356 = int_to_ptr.vmem [resolvable:$true] %s355
          %361 = dma.hbm_to_vmem [thread:$0]  %s354, 512, %s356, %s344, 256, 128, 8
        $region40: #{tpu_custom_call.1} parent=35 // pred_fallthru
          _
        // Predicated region
        $region41: #{tpu_custom_call.1} parent=35 // pred_check
          %p362 = pneg %p97
        $region42: #{tpu_custom_call.1} parent=35 // pred_check_branch
          %364 = sbr.rel (%p362) target = $region44
        $region43: #{tpu_custom_call.1} parent=35 // pred_region
          %s365 = sand.u32 %s28, 1
          %s366 = scalar_lea.sflag [#allocation9], %s365
          %s367 = sand.u32 %s87, 1
          %s368 = smul.addr %s367, 32
          %s369 = scalar_lea.vmem [#allocation8], %s368
          %s371 = ssub.s32 512, 512
          %372 = vsyncadd %s366, %s371
          %s373 = smul.addr %s36, 8
          %s374 = sadd.s32 %s37, %s373
          %s375 = smul.addr %s374, 128
          %s376 = scalar_lea.hbm %s1, %s375
          %s377 = sshll.u32 %s369, 4
          %s378 = int_to_ptr.vmem [resolvable:$true] %s377
          %383 = dma.hbm_to_vmem [thread:$0]  %s376, 512, %s378, %s366, 256, 128, 8
        $region44: #{tpu_custom_call.1} parent=35 // pred_fallthru
          _
      $region36: #{tpu_custom_call.1} parent=5 // pred_fallthru
        _
      %p384 = scmp.le.s32.totalorder 1, %s28
      %p385 = scmp.lt.s32.totalorder %s28, 9
      %p386 = pnand %p384, %p385
      %p387 = pneg %p386
      // Predicated region
      $region45: #{tpu_custom_call.1} parent=5 // pred_check
        _
      $region46: #{tpu_custom_call.1} parent=5 // pred_check_branch
        %389 = sbr.rel (%p386) target = $region48
      $region47: #{tpu_custom_call.1} parent=5 // pred_region
        %s390 = ssub.s32 %s28, 1
        %s391 = sand.u32 %s62, 1
        %s392 = scalar_lea.sflag [#allocation6], %s391
        %s393 = sand.u32 %s62, 1
        %s394 = smul.addr %s393, 32
        %s395 = scalar_lea.vmem [#allocation5], %s394
        // Predicated region
        $region49: #{tpu_custom_call.1} parent=47 // pred_check
          %p396 = pneg %p75
        $region50: #{tpu_custom_call.1} parent=47 // pred_check_branch
          %398 = sbr.rel (%p396) target = $region52
        $region51: #{tpu_custom_call.1} parent=47 // pred_region
          %399 = dma.done %s392, 512
        $region52: #{tpu_custom_call.1} parent=47 // pred_fallthru
          _
        %s400 = sand.u32 %s33, 1
        %s401 = scalar_lea.sflag [#allocation9], %s400
        %s402 = sand.u32 %s90, 1
        %s403 = smul.addr %s402, 32
        %s404 = scalar_lea.vmem [#allocation8], %s403
        // Predicated region
        $region53: #{tpu_custom_call.1} parent=47 // pred_check
          %p405 = pneg %p103
        $region54: #{tpu_custom_call.1} parent=47 // pred_check_branch
          %407 = sbr.rel (%p405) target = $region56
        $region55: #{tpu_custom_call.1} parent=47 // pred_region
          %408 = dma.done %s401, 512
        $region56: #{tpu_custom_call.1} parent=47 // pred_fallthru
          _
        // Predicated region
        $region57: #{tpu_custom_call.1} parent=47 // pred_check
          %p409 = pneg %p124
        $region58: #{tpu_custom_call.1} parent=47 // pred_check_branch
          %411 = sbr.rel (%p409) target = $region60
        $region59: #{tpu_custom_call.1} parent=47 // pred_region
          %412 = dma.done [#allocation9], 256
        $region60: #{tpu_custom_call.1} parent=47 // pred_fallthru
          _
        // Predicated region
        $region61: #{tpu_custom_call.1} parent=47 // pred_check
          %p413 = pneg %p145
        $region62: #{tpu_custom_call.1} parent=47 // pred_check_branch
          %415 = sbr.rel (%p413) target = $region64
        $region63: #{tpu_custom_call.1} parent=47 // pred_region
          %416 = dma.done [#allocation12], 256
        $region64: #{tpu_custom_call.1} parent=47 // pred_fallthru
          _
        // Predicated region
        $region65: #{tpu_custom_call.1} parent=47 // pred_check
          %p417 = pneg %p187
        $region66: #{tpu_custom_call.1} parent=47 // pred_check_branch
          %419 = sbr.rel (%p417) target = $region68
        $region67: #{tpu_custom_call.1} parent=47 // pred_region
          %420 = dma.done [#allocation12], 512
        $region68: #{tpu_custom_call.1} parent=47 // pred_fallthru
          _
        %s421 = sand.u32 %s62, 1
        %s422 = scalar_lea.sflag [#allocation6], %s421
        %s423 = sand.u32 %s62, 1
        %s424 = smul.addr %s423, 32
        %s425 = scalar_lea.vmem [#allocation5], %s424
        %p426 = pneg %p75
        %p427 = pneg %p72
        %s428 = sand.u32 %s33, 1
        %s429 = scalar_lea.sflag [#allocation9], %s428
        %s430 = sand.u32 %s90, 1
        %s431 = smul.addr %s430, 32
        %s432 = scalar_lea.vmem [#allocation8], %s431
        %p433 = pneg %p103
        %p434 = pneg %p100
        %p435 = pneg %p124
        %p436 = pneg %p121
        %p437 = pneg %p145
        %p438 = pneg %p142
        %p439 = pneg %p166
        %p440 = pneg %p163
        %p441 = pneg %p187
        %p442 = pneg %p184
        %p443 = pneg %p208
        %p444 = pneg %p205
        %p445 = pneg %p242
        %p446 = pneg %p239
        %s447 = sand.u32 %s229, 1
        %s448 = scalar_lea.sflag [#allocation7], %s447
        %s449 = sand.u32 %s229, 1
        %s450 = smul.addr %s449, 32
        %s451 = scalar_lea.vmem [#allocation14], %s450
        %p452 = pneg %p276
        %p453 = pneg %p273
        %s454 = sand.u32 %s263, 1
        %s455 = scalar_lea.sflag [#allocation16], %s454
        %s456 = sand.u32 %s263, 1
        %s457 = scalar_lea.vmem [#allocation15], %s456
        %p458 = scmp.eq.s32.totalorder %s38, 1
        %s459 = scalar_select %p458, %s39, 0
        %s460 = scalar_select %p458, %s40, 0
        %p461 = scmp.eq.s32.totalorder %s38, 1
        %s462 = scalar_select %p461, %s39, 0
        %s463 = scalar_select %p461, %s40, 0
        %p464 = scmp.eq.s32.totalorder %s39, 0
        %p465 = scmp.eq.s32.totalorder %s40, 0
        %p466 = pnand %p464, %p465
        %p467 = pneg %p466
        %p468 = scmp.eq.s32.totalorder %s38, 0
        %p469 = pnand %p468, %p467
        %p470 = pneg %p469
        // Predicated region
        $region69: #{tpu_custom_call.1} parent=47 // pred_check
          _
        $region70: #{tpu_custom_call.1} parent=47 // pred_check_branch
          %472 = sbr.rel (%p469) target = $region72
        $region71: #{tpu_custom_call.1} parent=47 // pred_region
          %vm473 = vcmask 7168
          %474 = vst.msk [vmem:[#allocation2] sm:$0xff] %vm473, 0.0
          %475 = vst.msk [vmem:[#allocation2 + $0x8] sm:$0xff] %vm473, 0.0
          %476 = vst.msk [vmem:[#allocation2 + $0x10] sm:$0xff] %vm473, 0.0
          %477 = vst.msk [vmem:[#allocation2 + $0x18] sm:$0xff] %vm473, 0.0
          %vm478 = vcmask 261120
          %479 = vst.msk [vmem:[#allocation3] sm:$0xff] %vm478, 0.0
          %480 = vst.msk [vmem:[#allocation3 + $0x8] sm:$0xff] %vm478, 0.0
          %481 = vst.msk [vmem:[#allocation3 + $0x10] sm:$0xff] %vm478, 0.0
          %482 = vst.msk [vmem:[#allocation3 + $0x18] sm:$0xff] %vm478, 0.0
        $region72: #{tpu_custom_call.1} parent=47 // pred_fallthru
          _
        %v483 = vld [vmem:[%s395] sm:$0xff]
        %v484 = vld [vmem:[%s395 + $0x8] sm:$0xff]
        %v485 = vld [vmem:[%s395 + $0x10] sm:$0xff]
        %v486 = vld [vmem:[%s395 + $0x18] sm:$0xff]
        %v487 = vld [vmem:[%s404] sm:$0xff]
        %v488 = vld [vmem:[%s404 + $0x8] sm:$0xff]
        %v489 = vld [vmem:[%s404 + $0x10] sm:$0xff]
        %v490 = vld [vmem:[%s404 + $0x18] sm:$0xff]
        %v491 = vld [vmem:[%s6] sm:$0xff]
        %v492 = vld [vmem:[%s6 + $0x8] sm:$0xff]
        %v493 = vld [vmem:[%s6] sm:$0x1]
        %v494 = vld [vmem:[#allocation10] sm:$0xff]
        %v495 = vld [vmem:[#allocation10 + $0x8] sm:$0xff]
        %v496 = vld [vmem:[#allocation11] sm:$0xff]
        %v497 = vld [vmem:[#allocation11 + $0x8] sm:$0xff]
        %vm498 = vcmask 261120
        %v500 = vsel %vm498, %v496, 0
        %v503 = vsel %vm498, %v497, 0
        %505 = vmatprep.subr.mxu0 0.0
        %506 = vmatpush1.msra.mxu0 0.0
        %507 = vmatprep.subr.mxu0 0.0
        %508 = vmatpush1.msra.mxu0 0.0
        %509 = vmatprep.subr.mxu0 0.0
        %510 = vmatpush1.msra.mxu0 0.0
        %511 = vmatprep.subr.mxu0 0.0
        %512 = vmatpush1.msra.mxu0 0.0
        %513 = vmatprep.subr.mxu0 0.0
        %514 = vmatpush1.msra.mxu0 0.0
        %515 = vmatprep.subr.mxu0 0.0
        %516 = vmatpush1.msra.mxu0 0.0
        %517 = vmatprep.subr.mxu0 0.0
        %518 = vmatpush1.msra.mxu0 0.0
        %519 = vmatprep.subr.mxu0 0.0
        %520 = vmatpush1.msra.mxu0 0.0
        %521 = vmatprep.subr.mxu0 0.0
        %522 = vmatpush1.msra.mxu0 0.0
        %523 = vmatprep.subr.mxu0 0.0
        %524 = vmatpush1.msra.mxu0 0.0
        %525 = vmatprep.subr.mxu0 0.0
        %526 = vmatpush1.msra.mxu0 0.0
        %527 = vmatprep.subr.mxu0 0.0
        %528 = vmatpush1.msra.mxu0 0.0
        %529 = vmatprep.subr.mxu0 0.0
        %530 = vmatpush1.msra.mxu0 %v490
        %531 = vmatprep.subr.mxu0 0.0
        %532 = vmatpush1.msra.mxu0 %v489
        %533 = vmatprep.subr.mxu0 0.0
        %534 = vmatpush1.msra.mxu0 %v488
        %535 = vmatprep.subr.mxu0 0.0
        %536 = vmatpush1.msra.mxu0 %v487
        %537 = vmatprep.subr.mxu0 0.0
        %538 = vmatpush2.msra.mxu0 0.0
        %539 = vmatprep.subr.mxu0 0.0
        %540 = vmatpush2.msra.mxu0 0.0
        %541 = vmatprep.subr.mxu0 0.0
        %542 = vmatpush2.msra.mxu0 0.0
        %543 = vmatprep.subr.mxu0 0.0
        %544 = vmatpush2.msra.mxu0 0.0
        %545 = vmatprep.subr.mxu0 0.0
        %546 = vmatpush2.msra.mxu0 0.0
        %547 = vmatprep.subr.mxu0 0.0
        %548 = vmatpush2.msra.mxu0 0.0
        %549 = vmatprep.subr.mxu0 0.0
        %550 = vmatpush2.msra.mxu0 0.0
        %551 = vmatprep.subr.mxu0 0.0
        %552 = vmatpush2.msra.mxu0 0.0
        %553 = vmatprep.subr.mxu0 0.0
        %554 = vmatpush2.msra.mxu0 0.0
        %555 = vmatprep.subr.mxu0 0.0
        %556 = vmatpush2.msra.mxu0 0.0
        %557 = vmatprep.subr.mxu0 0.0
        %558 = vmatpush2.msra.mxu0 0.0
        %559 = vmatprep.subr.mxu0 0.0
        %560 = vmatpush2.msra.mxu0 0.0
        %561 = vmatprep.subr.mxu0 0.0
        %562 = vmatpush2.msra.mxu0 0.0
        %563 = vmatprep.subr.mxu0 0.0
        %564 = vmatpush2.msra.mxu0 0.0
        %565 = vmatprep.subr.mxu0 0.0
        %566 = vmatpush2.msra.mxu0 0.0
        %567 = vmatprep.subr.mxu0 0.0
        %568 = vmatpush2.msra.mxu0 0.0
        %569 = vmatprep.mubr.f32.mxu0 0.0
        %570 = vmatmul.mubr.f32.gmra.mxu0 %v500
        %v571 = vpop.f32.mrf.mxu0
        %v572 = vadd.f32 0.0, %v571
        %v573 = vpop.f32.mrf.mxu0
        %574 = vmatprep.mubr.f32.mxu0 0.0
        %575 = vmatmul.mubr.f32.gmra.mxu0 %v503
        %v576 = vpop.f32.mrf.mxu0
        %v577 = vadd.f32 0.0, %v576
        %v578 = vpop.f32.mrf.mxu0
        %579 = vdwg.mxu0
        %v581 = vsel %vm498, %v494, 0
        %v584 = vsel %vm498, %v495, 0
        %586 = vmatprep.subr.mxu0 0.0
        %587 = vmatpush1.msra.mxu0 0.0
        %588 = vmatprep.subr.mxu0 0.0
        %589 = vmatpush1.msra.mxu0 0.0
        %590 = vmatprep.subr.mxu0 0.0
        %591 = vmatpush1.msra.mxu0 0.0
        %592 = vmatprep.subr.mxu0 0.0
        %593 = vmatpush1.msra.mxu0 0.0
        %594 = vmatprep.subr.mxu0 0.0
        %595 = vmatpush1.msra.mxu0 0.0
        %596 = vmatprep.subr.mxu0 0.0
        %597 = vmatpush1.msra.mxu0 0.0
        %598 = vmatprep.subr.mxu0 0.0
        %599 = vmatpush1.msra.mxu0 0.0
        %600 = vmatprep.subr.mxu0 0.0
        %601 = vmatpush1.msra.mxu0 0.0
        %602 = vmatprep.subr.mxu0 0.0
        %603 = vmatpush1.msra.mxu0 0.0
        %604 = vmatprep.subr.mxu0 0.0
        %605 = vmatpush1.msra.mxu0 0.0
        %606 = vmatprep.subr.mxu0 0.0
        %607 = vmatpush1.msra.mxu0 0.0
        %608 = vmatprep.subr.mxu0 0.0
        %609 = vmatpush1.msra.mxu0 0.0
        %610 = vmatprep.subr.mxu0 0.0
        %611 = vmatpush1.msra.mxu0 %v486
        %612 = vmatprep.subr.mxu0 0.0
        %613 = vmatpush1.msra.mxu0 %v485
        %614 = vmatprep.subr.mxu0 0.0
        %615 = vmatpush1.msra.mxu0 %v484
        %616 = vmatprep.subr.mxu0 0.0
        %617 = vmatpush1.msra.mxu0 %v483
        %618 = vmatprep.subr.mxu0 0.0
        %619 = vmatpush2.msra.mxu0 0.0
        %620 = vmatprep.subr.mxu0 0.0
        %621 = vmatpush2.msra.mxu0 0.0
        %622 = vmatprep.subr.mxu0 0.0
        %623 = vmatpush2.msra.mxu0 0.0
        %624 = vmatprep.subr.mxu0 0.0
        %625 = vmatpush2.msra.mxu0 0.0
        %626 = vmatprep.subr.mxu0 0.0
        %627 = vmatpush2.msra.mxu0 0.0
        %628 = vmatprep.subr.mxu0 0.0
        %629 = vmatpush2.msra.mxu0 0.0
        %630 = vmatprep.subr.mxu0 0.0
        %631 = vmatpush2.msra.mxu0 0.0
        %632 = vmatprep.subr.mxu0 0.0
        %633 = vmatpush2.msra.mxu0 0.0
        %634 = vmatprep.subr.mxu0 0.0
        %635 = vmatpush2.msra.mxu0 0.0
        %636 = vmatprep.subr.mxu0 0.0
        %637 = vmatpush2.msra.mxu0 0.0
        %638 = vmatprep.subr.mxu0 0.0
        %639 = vmatpush2.msra.mxu0 0.0
        %640 = vmatprep.subr.mxu0 0.0
        %641 = vmatpush2.msra.mxu0 0.0
        %642 = vmatprep.subr.mxu0 0.0
        %643 = vmatpush2.msra.mxu0 0.0
        %644 = vmatprep.subr.mxu0 0.0
        %645 = vmatpush2.msra.mxu0 0.0
        %646 = vmatprep.subr.mxu0 0.0
        %647 = vmatpush2.msra.mxu0 0.0
        %648 = vmatprep.subr.mxu0 0.0
        %649 = vmatpush2.msra.mxu0 0.0
        %650 = vmatprep.mubr.f32.mxu0 0.0
        %651 = vmatmul.mubr.f32.gmra.mxu0 %v581
        %v652 = vpop.f32.mrf.mxu0
        %v653 = vadd.f32 %v572, %v652
        %v654 = vpop.f32.mrf.mxu0
        %655 = vmatprep.mubr.f32.mxu0 0.0
        %656 = vmatmul.mubr.f32.gmra.mxu0 %v584
        %v657 = vpop.f32.mrf.mxu0
        %v658 = vadd.f32 %v577, %v657
        %v659 = vpop.f32.mrf.mxu0
        %660 = vdwg.mxu0
        %662 = vset.pattern.permute.xlu0 0
        %663 = vperm.xlu0 %662, %v491
        %v664 = vpop.permute.xlu0 %663
        %667 = vset.pattern.permute.xlu0 0
        %668 = vperm.xlu0 %667, %v492
        %v669 = vpop.permute.xlu0 %668
        %v671 = vadd.f32 %v653, %v664
        %v672 = vadd.f32 %v658, %v669
        %v673 = vmax.f32 %v671, 0.0
        %v674 = vmax.f32 %v672, 0.0
        %675 = vset.pattern.permute.xlu0 1
        %676 = vperm.xlu0 %675, %v491
        %v677 = vpop.permute.xlu0 %676
        %679 = vset.pattern.permute.xlu0 1
        %680 = vperm.xlu0 %679, %v492
        %v681 = vpop.permute.xlu0 %680
        %v683 = vmul.f32 %v673, %v677
        %v684 = vmul.f32 %v674, %v681
        %v685 = vadd.f32 %v683, %v684
        %v686 = vrot.slane %v685, 4
        %v687 = vadd.f32 %v685, %v686
        %v688 = vrot.slane %v687, 2
        %v689 = vadd.f32 %v687, %v688
        %v690 = vrot.slane %v689, 1
        %v691 = vadd.f32 %v689, %v690
        %693 = vset.pattern.permute.xlu0 6
        %694 = vperm.xlu0 %693, %v493
        %v695 = vpop.permute.xlu0 %694
        %v697 = vadd.f32 %v691, %v695
        %v698 = vsub.f32 0.0, %v697
        %v699 = vmul.f32 %v698, 1.442695
        %v700 = vpow.pop %v699
        %v701 = vadd.f32 %v700, 1.0
        %v702 = vrcp.pop %v701
        %v703 = vlaneseq
        %v704 = vshrl.u32 %v703, 7
        %v705 = vsub.s32 0, %v704
        %v706 = vrot.slane %v702, %v705
        %v707 = vmul.f32 %v706, %v483
        %v708 = vmul.f32 %v706, %v484
        %v709 = vmul.f32 %v706, %v485
        %v710 = vmul.f32 %v706, %v486
        %v711 = vld [vmem:[%s4] sm:$0xff]
        %v712 = vld [vmem:[%s4 + $0x8] sm:$0xff]
        %v713 = vld [vmem:[%s4 + $0x10] sm:$0xff]
        %v714 = vld [vmem:[%s4 + $0x18] sm:$0xff]
        %v716 = vsel %vm498, %v711, 0
        %v719 = vsel %vm498, %v712, 0
        %v722 = vsel %vm498, %v713, 0
        %v725 = vsel %vm498, %v714, 0
        %727 = vmatprep.subr.mxu0 0.0
        %728 = vmatpush1.msra.mxu0 0.0
        %729 = vmatprep.subr.mxu0 0.0
        %730 = vmatpush1.msra.mxu0 0.0
        %731 = vmatprep.subr.mxu0 0.0
        %732 = vmatpush1.msra.mxu0 0.0
        %733 = vmatprep.subr.mxu0 0.0
        %734 = vmatpush1.msra.mxu0 0.0
        %735 = vmatprep.subr.mxu0 0.0
        %736 = vmatpush1.msra.mxu0 0.0
        %737 = vmatprep.subr.mxu0 0.0
        %738 = vmatpush1.msra.mxu0 0.0
        %739 = vmatprep.subr.mxu0 0.0
        %740 = vmatpush1.msra.mxu0 0.0
        %741 = vmatprep.subr.mxu0 0.0
        %742 = vmatpush1.msra.mxu0 0.0
        %743 = vmatprep.subr.mxu0 0.0
        %744 = vmatpush1.msra.mxu0 0.0
        %745 = vmatprep.subr.mxu0 0.0
        %746 = vmatpush1.msra.mxu0 0.0
        %747 = vmatprep.subr.mxu0 0.0
        %748 = vmatpush1.msra.mxu0 0.0
        %749 = vmatprep.subr.mxu0 0.0
        %750 = vmatpush1.msra.mxu0 0.0
        %751 = vmatprep.subr.mxu0 0.0
        %752 = vmatpush1.msra.mxu0 %v710
        %753 = vmatprep.subr.mxu0 0.0
        %754 = vmatpush1.msra.mxu0 %v709
        %755 = vmatprep.subr.mxu0 0.0
        %756 = vmatpush1.msra.mxu0 %v708
        %757 = vmatprep.subr.mxu0 0.0
        %758 = vmatpush1.msra.mxu0 %v707
        %759 = vmatprep.subr.mxu0 0.0
        %760 = vmatpush2.msra.mxu0 0.0
        %761 = vmatprep.subr.mxu0 0.0
        %762 = vmatpush2.msra.mxu0 0.0
        %763 = vmatprep.subr.mxu0 0.0
        %764 = vmatpush2.msra.mxu0 0.0
        %765 = vmatprep.subr.mxu0 0.0
        %766 = vmatpush2.msra.mxu0 0.0
        %767 = vmatprep.subr.mxu0 0.0
        %768 = vmatpush2.msra.mxu0 0.0
        %769 = vmatprep.subr.mxu0 0.0
        %770 = vmatpush2.msra.mxu0 0.0
        %771 = vmatprep.subr.mxu0 0.0
        %772 = vmatpush2.msra.mxu0 0.0
        %773 = vmatprep.subr.mxu0 0.0
        %774 = vmatpush2.msra.mxu0 0.0
        %775 = vmatprep.subr.mxu0 0.0
        %776 = vmatpush2.msra.mxu0 0.0
        %777 = vmatprep.subr.mxu0 0.0
        %778 = vmatpush2.msra.mxu0 0.0
        %779 = vmatprep.subr.mxu0 0.0
        %780 = vmatpush2.msra.mxu0 0.0
        %781 = vmatprep.subr.mxu0 0.0
        %782 = vmatpush2.msra.mxu0 0.0
        %783 = vmatprep.subr.mxu0 0.0
        %784 = vmatpush2.msra.mxu0 0.0
        %785 = vmatprep.subr.mxu0 0.0
        %786 = vmatpush2.msra.mxu0 0.0
        %787 = vmatprep.subr.mxu0 0.0
        %788 = vmatpush2.msra.mxu0 0.0
        %789 = vmatprep.subr.mxu0 0.0
        %790 = vmatpush2.msra.mxu0 0.0
        %791 = vmatprep.mubr.f32.mxu0 0.0
        %792 = vmatmul.mubr.f32.gmra.mxu0 %v716
        %v793 = vpop.f32.mrf.mxu0
        %v794 = vadd.f32 0.0, %v793
        %v795 = vpop.f32.mrf.mxu0
        %796 = vmatprep.mubr.f32.mxu0 0.0
        %797 = vmatmul.mubr.f32.gmra.mxu0 %v719
        %v798 = vpop.f32.mrf.mxu0
        %v799 = vadd.f32 0.0, %v798
        %v800 = vpop.f32.mrf.mxu0
        %801 = vmatprep.mubr.f32.mxu0 0.0
        %802 = vmatmul.mubr.f32.gmra.mxu0 %v722
        %v803 = vpop.f32.mrf.mxu0
        %v804 = vadd.f32 0.0, %v803
        %v805 = vpop.f32.mrf.mxu0
        %806 = vmatprep.mubr.f32.mxu0 0.0
        %807 = vmatmul.mubr.f32.gmra.mxu0 %v725
        %v808 = vpop.f32.mrf.mxu0
        %v809 = vadd.f32 0.0, %v808
        %v810 = vpop.f32.mrf.mxu0
        %811 = vdwg.mxu0
        // Predicated region
        $region73: #{tpu_custom_call.1} parent=47 // pred_check
          %p812 = pneg %p468
        $region74: #{tpu_custom_call.1} parent=47 // pred_check_branch
          %814 = sbr.rel (%p812) target = $region76
        $region75: #{tpu_custom_call.1} parent=47 // pred_region
          %v815 = vld [vmem:[#allocation2] sm:$0xff]
          %v816 = vld [vmem:[#allocation2 + $0x8] sm:$0xff]
          %v817 = vld [vmem:[#allocation2 + $0x10] sm:$0xff]
          %v818 = vld [vmem:[#allocation2 + $0x18] sm:$0xff]
          %819 = vadd.xlane.f32.xlu0 %v794
          %v820 = vpop.xlane.xlu0 %819
          %821 = vadd.xlane.f32.xlu0 %v799
          %v822 = vpop.xlane.xlu0 %821
          %823 = vadd.xlane.f32.xlu0 %v804
          %v824 = vpop.xlane.xlu0 %823
          %825 = vadd.xlane.f32.xlu0 %v809
          %v826 = vpop.xlane.xlu0 %825
          %v827 = vadd.f32 %v815, %v820
          %v828 = vadd.f32 %v816, %v822
          %v829 = vadd.f32 %v817, %v824
          %v830 = vadd.f32 %v818, %v826
          %vm831 = vcmask 7168
          %832 = vst.msk [vmem:[#allocation2] sm:$0xff] %vm831, %v827
          %833 = vst.msk [vmem:[#allocation2 + $0x8] sm:$0xff] %vm831, %v828
          %834 = vst.msk [vmem:[#allocation2 + $0x10] sm:$0xff] %vm831, %v829
          %835 = vst.msk [vmem:[#allocation2 + $0x18] sm:$0xff] %vm831, %v830
          %v836 = vld [vmem:[#allocation3] sm:$0xff]
          %v837 = vld [vmem:[#allocation3 + $0x8] sm:$0xff]
          %v838 = vld [vmem:[#allocation3 + $0x10] sm:$0xff]
          %v839 = vld [vmem:[#allocation3 + $0x18] sm:$0xff]
          %840 = vmatprep.subr.mxu0 0.0
          %841 = vmatpush1.xpose.msra.mxu0 0.0
          %842 = vmatprep.subr.mxu0 0.0
          %843 = vmatpush1.xpose.msra.mxu0 0.0
          %844 = vmatprep.subr.mxu0 0.0
          %845 = vmatpush1.xpose.msra.mxu0 0.0
          %846 = vmatprep.subr.mxu0 0.0
          %847 = vmatpush1.xpose.msra.mxu0 0.0
          %848 = vmatprep.subr.mxu0 0.0
          %849 = vmatpush1.xpose.msra.mxu0 0.0
          %850 = vmatprep.subr.mxu0 0.0
          %851 = vmatpush1.xpose.msra.mxu0 0.0
          %852 = vmatprep.subr.mxu0 0.0
          %853 = vmatpush1.xpose.msra.mxu0 0.0
          %854 = vmatprep.subr.mxu0 0.0
          %855 = vmatpush1.xpose.msra.mxu0 0.0
          %856 = vmatprep.subr.mxu0 0.0
          %857 = vmatpush1.xpose.msra.mxu0 0.0
          %858 = vmatprep.subr.mxu0 0.0
          %859 = vmatpush1.xpose.msra.mxu0 0.0
          %860 = vmatprep.subr.mxu0 0.0
          %861 = vmatpush1.xpose.msra.mxu0 0.0
          %862 = vmatprep.subr.mxu0 0.0
          %863 = vmatpush1.xpose.msra.mxu0 0.0
          %864 = vmatprep.subr.mxu0 0.0
          %865 = vmatpush1.xpose.msra.mxu0 %v809
          %866 = vmatprep.subr.mxu0 0.0
          %867 = vmatpush1.xpose.msra.mxu0 %v804
          %868 = vmatprep.subr.mxu0 0.0
          %869 = vmatpush1.xpose.msra.mxu0 %v799
          %870 = vmatprep.subr.mxu0 0.0
          %871 = vmatpush1.xpose.msra.mxu0 %v794
          %872 = vmatprep.subr.mxu0 0.0
          %873 = vmatpush2.xpose.msra.mxu0 0.0
          %874 = vmatprep.subr.mxu0 0.0
          %875 = vmatpush2.xpose.msra.mxu0 0.0
          %876 = vmatprep.subr.mxu0 0.0
          %877 = vmatpush2.xpose.msra.mxu0 0.0
          %878 = vmatprep.subr.mxu0 0.0
          %879 = vmatpush2.xpose.msra.mxu0 0.0
          %880 = vmatprep.subr.mxu0 0.0
          %881 = vmatpush2.xpose.msra.mxu0 0.0
          %882 = vmatprep.subr.mxu0 0.0
          %883 = vmatpush2.xpose.msra.mxu0 0.0
          %884 = vmatprep.subr.mxu0 0.0
          %885 = vmatpush2.xpose.msra.mxu0 0.0
          %886 = vmatprep.subr.mxu0 0.0
          %887 = vmatpush2.xpose.msra.mxu0 0.0
          %888 = vmatprep.subr.mxu0 0.0
          %889 = vmatpush2.xpose.msra.mxu0 0.0
          %890 = vmatprep.subr.mxu0 0.0
          %891 = vmatpush2.xpose.msra.mxu0 0.0
          %892 = vmatprep.subr.mxu0 0.0
          %893 = vmatpush2.xpose.msra.mxu0 0.0
          %894 = vmatprep.subr.mxu0 0.0
          %895 = vmatpush2.xpose.msra.mxu0 0.0
          %896 = vmatprep.subr.mxu0 0.0
          %897 = vmatpush2.xpose.msra.mxu0 0.0
          %898 = vmatprep.subr.mxu0 0.0
          %899 = vmatpush2.xpose.msra.mxu0 0.0
          %900 = vmatprep.subr.mxu0 0.0
          %901 = vmatpush2.xpose.msra.mxu0 0.0
          %902 = vmatprep.subr.mxu0 0.0
          %903 = vmatpush2.xpose.msra.mxu0 0.0
          %904 = vmatprep.mubr.f32.mxu0 0.0
          %905 = vmatmul.mubr.f32.gmra.mxu0 %v794
          %v906 = vpop.f32.mrf.mxu0
          %v907 = vadd.f32 0.0, %v906
          %v908 = vpop.f32.mrf.mxu0
          %909 = vmatprep.mubr.f32.mxu0 0.0
          %910 = vmatmul.mubr.f32.gmra.mxu0 %v799
          %v911 = vpop.f32.mrf.mxu0
          %v912 = vadd.f32 0.0, %v911
          %v913 = vpop.f32.mrf.mxu0
          %914 = vmatprep.mubr.f32.mxu0 0.0
          %915 = vmatmul.mubr.f32.gmra.mxu0 %v804
          %v916 = vpop.f32.mrf.mxu0
          %v917 = vadd.f32 0.0, %v916
          %v918 = vpop.f32.mrf.mxu0
          %919 = vmatprep.mubr.f32.mxu0 0.0
          %920 = vmatmul.mubr.f32.gmra.mxu0 %v809
          %v921 = vpop.f32.mrf.mxu0
          %v922 = vadd.f32 0.0, %v921
          %v923 = vpop.f32.mrf.mxu0
          %924 = vdwg.mxu0
          %v925 = vadd.f32 %v836, %v907
          %v926 = vadd.f32 %v837, %v912
          %v927 = vadd.f32 %v838, %v917
          %v928 = vadd.f32 %v839, %v922
          %929 = vst.msk [vmem:[#allocation3] sm:$0xff] %vm498, %v925
          %930 = vst.msk [vmem:[#allocation3 + $0x8] sm:$0xff] %vm498, %v926
          %931 = vst.msk [vmem:[#allocation3 + $0x10] sm:$0xff] %vm498, %v927
          %932 = vst.msk [vmem:[#allocation3 + $0x18] sm:$0xff] %vm498, %v928
        $region76: #{tpu_custom_call.1} parent=47 // pred_fallthru
          _
        %p933 = scmp.eq.s32.totalorder %s38, 1
        %p934 = pnand %p933, %p467
        %p935 = pneg %p934
        // Predicated region
        $region77: #{tpu_custom_call.1} parent=47 // pred_check
          _
        $region78: #{tpu_custom_call.1} parent=47 // pred_check_branch
          %937 = sbr.rel (%p934) target = $region80
        $region79: #{tpu_custom_call.1} parent=47 // pred_region
          %v938 = vld [vmem:[#allocation2] sm:$0xff]
          %v939 = vld [vmem:[#allocation2 + $0x8] sm:$0xff]
          %v940 = vld [vmem:[#allocation2 + $0x10] sm:$0xff]
          %v941 = vld [vmem:[#allocation2 + $0x18] sm:$0xff]
          %v942 = vld [vmem:[#allocation3] sm:$0xff]
          %v943 = vld [vmem:[#allocation3 + $0x8] sm:$0xff]
          %v944 = vld [vmem:[#allocation3 + $0x10] sm:$0xff]
          %v945 = vld [vmem:[#allocation3 + $0x18] sm:$0xff]
          %v946 = vld [vmem:[%s6] sm:$0xff]
          %v947 = vld [vmem:[%s6 + $0x8] sm:$0xff]
          %v948 = vld [vmem:[%s6 + $0x10] sm:$0xff]
          %v949 = vld [vmem:[%s6 + $0x18] sm:$0xff]
          %v950 = vlaneseq
          %v951 = vshrl.u32 %v950, 7
          %v952 = vadd.s32 %v951, 8
          %v953 = vadd.s32 %v951, 16
          %v954 = vadd.s32 %v951, 24
          %v955 = vlaneseq
          %v956 = vand.u32 %v955, 127
          %vm957 = vcmp.eq.s32.totalorder %v951, %v956
          %vm958 = vcmp.eq.s32.totalorder %v952, %v956
          %vm959 = vcmp.eq.s32.totalorder %v953, %v956
          %vm960 = vcmp.eq.s32.totalorder %v954, %v956
          %v961 = vsel %vm957, %v942, 0.0
          %v962 = vsel %vm958, %v943, 0.0
          %v963 = vsel %vm959, %v944, 0.0
          %v964 = vsel %vm960, %v945, 0.0
          %v965 = vsel %vm498, %v961, 0.0
          %966 = vadd.xlane.f32.xlu0 %v965
          %v967 = vpop.xlane.xlu0 %966
          %v968 = vsel %vm498, %v962, 0.0
          %969 = vadd.xlane.f32.xlu0 %v968
          %v970 = vpop.xlane.xlu0 %969
          %v971 = vsel %vm498, %v963, 0.0
          %972 = vadd.xlane.f32.xlu0 %v971
          %v973 = vpop.xlane.xlu0 %972
          %v974 = vsel %vm498, %v964, 0.0
          %975 = vadd.xlane.f32.xlu0 %v974
          %v976 = vpop.xlane.xlu0 %975
          %v977 = vmul.f32 %v938, 0.001953125
          %v978 = vmul.f32 %v939, 0.001953125
          %v979 = vmul.f32 %v940, 0.001953125
          %v980 = vmul.f32 %v941, 0.001953125
          %v981 = vmul.f32 %v967, 0.001953125
          %v982 = vmul.f32 %v970, 0.001953125
          %v983 = vmul.f32 %v973, 0.001953125
          %v984 = vmul.f32 %v976, 0.001953125
          %v985 = vmul.f32 %v977, %v977
          %v986 = vmul.f32 %v978, %v978
          %v987 = vmul.f32 %v979, %v979
          %v988 = vmul.f32 %v980, %v980
          %v989 = vsub.f32 %v981, %v985
          %v990 = vsub.f32 %v982, %v986
          %v991 = vsub.f32 %v983, %v987
          %v992 = vsub.f32 %v984, %v988
          %v993 = vadd.f32 %v989, 1e-05
          %v994 = vadd.f32 %v990, 1e-05
          %v995 = vadd.f32 %v991, 1e-05
          %v996 = vadd.f32 %v992, 1e-05
          %v997 = vrsqrt.pop %v993
          %v998 = vrsqrt.pop %v994
          %v999 = vrsqrt.pop %v995
          %v1000 = vrsqrt.pop %v996
          %1005 = vrot.lane.b32.xlu0 %v997, 2
          %v1006 = vpop.permute.xlu0 %1005
          %1007 = vrot.lane.b32.xlu0 %v998, 2
          %v1008 = vpop.permute.xlu0 %1007
          %1009 = vrot.lane.b32.xlu0 %v999, 2
          %v1010 = vpop.permute.xlu0 %1009
          %1011 = vrot.lane.b32.xlu0 %v1000, 2
          %v1012 = vpop.permute.xlu0 %1011
          %v1017 = vmul.f32 %v946, %v1006
          %v1018 = vmul.f32 %v947, %v1008
          %v1019 = vmul.f32 %v948, %v1010
          %v1020 = vmul.f32 %v949, %v1012
          %1025 = vrot.lane.b32.xlu0 %v977, 2
          %v1026 = vpop.permute.xlu0 %1025
          %1027 = vrot.lane.b32.xlu0 %v978, 2
          %v1028 = vpop.permute.xlu0 %1027
          %1029 = vrot.lane.b32.xlu0 %v979, 2
          %v1030 = vpop.permute.xlu0 %1029
          %1031 = vrot.lane.b32.xlu0 %v980, 2
          %v1032 = vpop.permute.xlu0 %1031
          %v1037 = vmul.f32 %v1017, %v1026
          %v1038 = vmul.f32 %v1018, %v1028
          %v1039 = vmul.f32 %v1019, %v1030
          %v1040 = vmul.f32 %v1020, %v1032
          %1045 = vrot.lane.b32.xlu0 %v1037, 1
          %v1046 = vpop.permute.xlu0 %1045
          %1047 = vrot.lane.b32.xlu0 %v1038, 1
          %v1048 = vpop.permute.xlu0 %1047
          %1049 = vrot.lane.b32.xlu0 %v1039, 1
          %v1050 = vpop.permute.xlu0 %1049
          %1051 = vrot.lane.b32.xlu0 %v1040, 1
          %v1052 = vpop.permute.xlu0 %1051
          %v1057 = vsub.f32 %v946, %v1046
          %v1058 = vsub.f32 %v947, %v1048
          %v1059 = vsub.f32 %v948, %v1050
          %v1060 = vsub.f32 %v949, %v1052
          %v1061 = vld [vmem:[#allocation13] sm:$0xff]
          %v1062 = vld [vmem:[#allocation13 + $0x8] sm:$0xff]
          %v1063 = vld [vmem:[#allocation13 + $0x10] sm:$0xff]
          %v1064 = vld [vmem:[#allocation13 + $0x18] sm:$0xff]
          %1069 = vrot.lane.b32.xlu0 %v938, 2
          %v1070 = vpop.permute.xlu0 %1069
          %1071 = vrot.lane.b32.xlu0 %v939, 2
          %v1072 = vpop.permute.xlu0 %1071
          %1073 = vrot.lane.b32.xlu0 %v940, 2
          %v1074 = vpop.permute.xlu0 %1073
          %1075 = vrot.lane.b32.xlu0 %v941, 2
          %v1076 = vpop.permute.xlu0 %1075
          %v1081 = vmul.f32 %v1017, %v1070
          %v1082 = vmul.f32 %v1018, %v1072
          %v1083 = vmul.f32 %v1019, %v1074
          %v1084 = vmul.f32 %v1020, %v1076
          %1089 = vrot.lane.b32.xlu0 %v1081, 126
          %v1090 = vpop.permute.xlu0 %1089
          %1091 = vrot.lane.b32.xlu0 %v1082, 126
          %v1092 = vpop.permute.xlu0 %1091
          %1093 = vrot.lane.b32.xlu0 %v1083, 126
          %v1094 = vpop.permute.xlu0 %1093
          %1095 = vrot.lane.b32.xlu0 %v1084, 126
          %v1096 = vpop.permute.xlu0 %1095
          %v1102 = vsel %vm498, %v1061, 0
          %v1105 = vsel %vm498, %v1062, 0
          %v1108 = vsel %vm498, %v1063, 0
          %v1111 = vsel %vm498, %v1064, 0
          %1113 = vmatprep.subr.mxu0 0.0
          %1114 = vmatpush1.msra.mxu0 0.0
          %1115 = vmatprep.subr.mxu0 0.0
          %1116 = vmatpush1.msra.mxu0 0.0
          %1117 = vmatprep.subr.mxu0 0.0
          %1118 = vmatpush1.msra.mxu0 0.0
          %1119 = vmatprep.subr.mxu0 0.0
          %1120 = vmatpush1.msra.mxu0 0.0
          %1121 = vmatprep.subr.mxu0 0.0
          %1122 = vmatpush1.msra.mxu0 0.0
          %1123 = vmatprep.subr.mxu0 0.0
          %1124 = vmatpush1.msra.mxu0 0.0
          %1125 = vmatprep.subr.mxu0 0.0
          %1126 = vmatpush1.msra.mxu0 0.0
          %1127 = vmatprep.subr.mxu0 0.0
          %1128 = vmatpush1.msra.mxu0 0.0
          %1129 = vmatprep.subr.mxu0 0.0
          %1130 = vmatpush1.msra.mxu0 0.0
          %1131 = vmatprep.subr.mxu0 0.0
          %1132 = vmatpush1.msra.mxu0 0.0
          %1133 = vmatprep.subr.mxu0 0.0
          %1134 = vmatpush1.msra.mxu0 0.0
          %1135 = vmatprep.subr.mxu0 0.0
          %1136 = vmatpush1.msra.mxu0 0.0
          %1137 = vmatprep.subr.mxu0 0.0
          %1138 = vmatpush1.msra.mxu0 %v1096
          %1139 = vmatprep.subr.mxu0 0.0
          %1140 = vmatpush1.msra.mxu0 %v1094
          %1141 = vmatprep.subr.mxu0 0.0
          %1142 = vmatpush1.msra.mxu0 %v1092
          %1143 = vmatprep.subr.mxu0 0.0
          %1144 = vmatpush1.msra.mxu0 %v1090
          %1145 = vmatprep.subr.mxu0 0.0
          %1146 = vmatpush2.msra.mxu0 0.0
          %1147 = vmatprep.subr.mxu0 0.0
          %1148 = vmatpush2.msra.mxu0 0.0
          %1149 = vmatprep.subr.mxu0 0.0
          %1150 = vmatpush2.msra.mxu0 0.0
          %1151 = vmatprep.subr.mxu0 0.0
          %1152 = vmatpush2.msra.mxu0 0.0
          %1153 = vmatprep.subr.mxu0 0.0
          %1154 = vmatpush2.msra.mxu0 0.0
          %1155 = vmatprep.subr.mxu0 0.0
          %1156 = vmatpush2.msra.mxu0 0.0
          %1157 = vmatprep.subr.mxu0 0.0
          %1158 = vmatpush2.msra.mxu0 0.0
          %1159 = vmatprep.subr.mxu0 0.0
          %1160 = vmatpush2.msra.mxu0 0.0
          %1161 = vmatprep.subr.mxu0 0.0
          %1162 = vmatpush2.msra.mxu0 0.0
          %1163 = vmatprep.subr.mxu0 0.0
          %1164 = vmatpush2.msra.mxu0 0.0
          %1165 = vmatprep.subr.mxu0 0.0
          %1166 = vmatpush2.msra.mxu0 0.0
          %1167 = vmatprep.subr.mxu0 0.0
          %1168 = vmatpush2.msra.mxu0 0.0
          %1169 = vmatprep.subr.mxu0 0.0
          %1170 = vmatpush2.msra.mxu0 0.0
          %1171 = vmatprep.subr.mxu0 0.0
          %1172 = vmatpush2.msra.mxu0 0.0
          %1173 = vmatprep.subr.mxu0 0.0
          %1174 = vmatpush2.msra.mxu0 0.0
          %1175 = vmatprep.subr.mxu0 0.0
          %1176 = vmatpush2.msra.mxu0 0.0
          %1177 = vmatprep.mubr.f32.mxu0 0.0
          %1178 = vmatmul.mubr.f32.gmra.mxu0 %v1102
          %v1179 = vpop.f32.mrf.mxu0
          %v1180 = vadd.f32 0.0, %v1179
          %v1181 = vpop.f32.mrf.mxu0
          %1182 = vmatprep.mubr.f32.mxu0 0.0
          %1183 = vmatmul.mubr.f32.gmra.mxu0 %v1105
          %v1184 = vpop.f32.mrf.mxu0
          %v1185 = vadd.f32 0.0, %v1184
          %v1186 = vpop.f32.mrf.mxu0
          %1187 = vmatprep.mubr.f32.mxu0 0.0
          %1188 = vmatmul.mubr.f32.gmra.mxu0 %v1108
          %v1189 = vpop.f32.mrf.mxu0
          %v1190 = vadd.f32 0.0, %v1189
          %v1191 = vpop.f32.mrf.mxu0
          %1192 = vmatprep.mubr.f32.mxu0 0.0
          %1193 = vmatmul.mubr.f32.gmra.mxu0 %v1111
          %v1194 = vpop.f32.mrf.mxu0
          %v1195 = vadd.f32 0.0, %v1194
          %v1196 = vpop.f32.mrf.mxu0
          %1197 = vdwg.mxu0
          %1202 = vrot.lane.b32.xlu0 %v1057, 125
          %v1203 = vpop.permute.xlu0 %1202
          %1204 = vrot.lane.b32.xlu0 %v1058, 125
          %v1205 = vpop.permute.xlu0 %1204
          %1206 = vrot.lane.b32.xlu0 %v1059, 125
          %v1207 = vpop.permute.xlu0 %1206
          %1208 = vrot.lane.b32.xlu0 %v1060, 125
          %v1209 = vpop.permute.xlu0 %1208
          %1214 = vmatprep.subr.mxu0 0.0
          %1215 = vmatpush1.msra.mxu0 0.0
          %1216 = vmatprep.subr.mxu0 0.0
          %1217 = vmatpush1.msra.mxu0 0.0
          %1218 = vmatprep.subr.mxu0 0.0
          %1219 = vmatpush1.msra.mxu0 0.0
          %1220 = vmatprep.subr.mxu0 0.0
          %1221 = vmatpush1.msra.mxu0 0.0
          %1222 = vmatprep.subr.mxu0 0.0
          %1223 = vmatpush1.msra.mxu0 0.0
          %1224 = vmatprep.subr.mxu0 0.0
          %1225 = vmatpush1.msra.mxu0 0.0
          %1226 = vmatprep.subr.mxu0 0.0
          %1227 = vmatpush1.msra.mxu0 0.0
          %1228 = vmatprep.subr.mxu0 0.0
          %1229 = vmatpush1.msra.mxu0 0.0
          %1230 = vmatprep.subr.mxu0 0.0
          %1231 = vmatpush1.msra.mxu0 0.0
          %1232 = vmatprep.subr.mxu0 0.0
          %1233 = vmatpush1.msra.mxu0 0.0
          %1234 = vmatprep.subr.mxu0 0.0
          %1235 = vmatpush1.msra.mxu0 0.0
          %1236 = vmatprep.subr.mxu0 0.0
          %1237 = vmatpush1.msra.mxu0 0.0
          %1238 = vmatprep.subr.mxu0 0.0
          %1239 = vmatpush1.msra.mxu0 %v1209
          %1240 = vmatprep.subr.mxu0 0.0
          %1241 = vmatpush1.msra.mxu0 %v1207
          %1242 = vmatprep.subr.mxu0 0.0
          %1243 = vmatpush1.msra.mxu0 %v1205
          %1244 = vmatprep.subr.mxu0 0.0
          %1245 = vmatpush1.msra.mxu0 %v1203
          %1246 = vmatprep.subr.mxu0 0.0
          %1247 = vmatpush2.msra.mxu0 0.0
          %1248 = vmatprep.subr.mxu0 0.0
          %1249 = vmatpush2.msra.mxu0 0.0
          %1250 = vmatprep.subr.mxu0 0.0
          %1251 = vmatpush2.msra.mxu0 0.0
          %1252 = vmatprep.subr.mxu0 0.0
          %1253 = vmatpush2.msra.mxu0 0.0
          %1254 = vmatprep.subr.mxu0 0.0
          %1255 = vmatpush2.msra.mxu0 0.0
          %1256 = vmatprep.subr.mxu0 0.0
          %1257 = vmatpush2.msra.mxu0 0.0
          %1258 = vmatprep.subr.mxu0 0.0
          %1259 = vmatpush2.msra.mxu0 0.0
          %1260 = vmatprep.subr.mxu0 0.0
          %1261 = vmatpush2.msra.mxu0 0.0
          %1262 = vmatprep.subr.mxu0 0.0
          %1263 = vmatpush2.msra.mxu0 0.0
          %1264 = vmatprep.subr.mxu0 0.0
          %1265 = vmatpush2.msra.mxu0 0.0
          %1266 = vmatprep.subr.mxu0 0.0
          %1267 = vmatpush2.msra.mxu0 0.0
          %1268 = vmatprep.subr.mxu0 0.0
          %1269 = vmatpush2.msra.mxu0 0.0
          %1270 = vmatprep.subr.mxu0 0.0
          %1271 = vmatpush2.msra.mxu0 0.0
          %1272 = vmatprep.subr.mxu0 0.0
          %1273 = vmatpush2.msra.mxu0 0.0
          %1274 = vmatprep.subr.mxu0 0.0
          %1275 = vmatpush2.msra.mxu0 0.0
          %1276 = vmatprep.subr.mxu0 0.0
          %1277 = vmatpush2.msra.mxu0 0.0
          %1278 = vmatprep.mubr.f32.mxu0 0.0
          %1279 = vmatmul.mubr.f32.gmra.mxu0 %v1102
          %v1280 = vpop.f32.mrf.mxu0
          %v1281 = vadd.f32 0.0, %v1280
          %v1282 = vpop.f32.mrf.mxu0
          %1283 = vmatprep.mubr.f32.mxu0 0.0
          %1284 = vmatmul.mubr.f32.gmra.mxu0 %v1105
          %v1285 = vpop.f32.mrf.mxu0
          %v1286 = vadd.f32 0.0, %v1285
          %v1287 = vpop.f32.mrf.mxu0
          %1288 = vmatprep.mubr.f32.mxu0 0.0
          %1289 = vmatmul.mubr.f32.gmra.mxu0 %v1108
          %v1290 = vpop.f32.mrf.mxu0
          %v1291 = vadd.f32 0.0, %v1290
          %v1292 = vpop.f32.mrf.mxu0
          %1293 = vmatprep.mubr.f32.mxu0 0.0
          %1294 = vmatmul.mubr.f32.gmra.mxu0 %v1111
          %v1295 = vpop.f32.mrf.mxu0
          %v1296 = vadd.f32 0.0, %v1295
          %v1297 = vpop.f32.mrf.mxu0
          %1298 = vdwg.mxu0
          %1300 = vset.pattern.permute.xlu0 2
          %1301 = vperm.xlu0 %1300, %v1017
          %v1302 = vpop.permute.xlu0 %1301
          %1305 = vset.pattern.permute.xlu0 2
          %1306 = vperm.xlu0 %1305, %v1018
          %v1307 = vpop.permute.xlu0 %1306
          %1310 = vset.pattern.permute.xlu0 2
          %1311 = vperm.xlu0 %1310, %v1019
          %v1312 = vpop.permute.xlu0 %1311
          %1315 = vset.pattern.permute.xlu0 2
          %1316 = vperm.xlu0 %1315, %v1020
          %v1317 = vpop.permute.xlu0 %1316
          %v1319 = vmul.f32 %v1302, %v942
          %v1320 = vmul.f32 %v1307, %v943
          %v1321 = vmul.f32 %v1312, %v944
          %v1322 = vmul.f32 %v1317, %v945
          %1323 = vmatprep.subr.mxu0 0.0
          %1324 = vmatpush1.msra.mxu0 0.0
          %1325 = vmatprep.subr.mxu0 0.0
          %1326 = vmatpush1.msra.mxu0 0.0
          %1327 = vmatprep.subr.mxu0 0.0
          %1328 = vmatpush1.msra.mxu0 0.0
          %1329 = vmatprep.subr.mxu0 0.0
          %1330 = vmatpush1.msra.mxu0 0.0
          %1331 = vmatprep.subr.mxu0 0.0
          %1332 = vmatpush1.msra.mxu0 0.0
          %1333 = vmatprep.subr.mxu0 0.0
          %1334 = vmatpush1.msra.mxu0 0.0
          %1335 = vmatprep.subr.mxu0 0.0
          %1336 = vmatpush1.msra.mxu0 0.0
          %1337 = vmatprep.subr.mxu0 0.0
          %1338 = vmatpush1.msra.mxu0 0.0
          %1339 = vmatprep.subr.mxu0 0.0
          %1340 = vmatpush1.msra.mxu0 0.0
          %1341 = vmatprep.subr.mxu0 0.0
          %1342 = vmatpush1.msra.mxu0 0.0
          %1343 = vmatprep.subr.mxu0 0.0
          %1344 = vmatpush1.msra.mxu0 0.0
          %1345 = vmatprep.subr.mxu0 0.0
          %1346 = vmatpush1.msra.mxu0 0.0
          %1347 = vmatprep.subr.mxu0 0.0
          %1348 = vmatpush1.msra.mxu0 %v1322
          %1349 = vmatprep.subr.mxu0 0.0
          %1350 = vmatpush1.msra.mxu0 %v1321
          %1351 = vmatprep.subr.mxu0 0.0
          %1352 = vmatpush1.msra.mxu0 %v1320
          %1353 = vmatprep.subr.mxu0 0.0
          %1354 = vmatpush1.msra.mxu0 %v1319
          %1355 = vmatprep.subr.mxu0 0.0
          %1356 = vmatpush2.msra.mxu0 0.0
          %1357 = vmatprep.subr.mxu0 0.0
          %1358 = vmatpush2.msra.mxu0 0.0
          %1359 = vmatprep.subr.mxu0 0.0
          %1360 = vmatpush2.msra.mxu0 0.0
          %1361 = vmatprep.subr.mxu0 0.0
          %1362 = vmatpush2.msra.mxu0 0.0
          %1363 = vmatprep.subr.mxu0 0.0
          %1364 = vmatpush2.msra.mxu0 0.0
          %1365 = vmatprep.subr.mxu0 0.0
          %1366 = vmatpush2.msra.mxu0 0.0
          %1367 = vmatprep.subr.mxu0 0.0
          %1368 = vmatpush2.msra.mxu0 0.0
          %1369 = vmatprep.subr.mxu0 0.0
          %1370 = vmatpush2.msra.mxu0 0.0
          %1371 = vmatprep.subr.mxu0 0.0
          %1372 = vmatpush2.msra.mxu0 0.0
          %1373 = vmatprep.subr.mxu0 0.0
          %1374 = vmatpush2.msra.mxu0 0.0
          %1375 = vmatprep.subr.mxu0 0.0
          %1376 = vmatpush2.msra.mxu0 0.0
          %1377 = vmatprep.subr.mxu0 0.0
          %1378 = vmatpush2.msra.mxu0 0.0
          %1379 = vmatprep.subr.mxu0 0.0
          %1380 = vmatpush2.msra.mxu0 0.0
          %1381 = vmatprep.subr.mxu0 0.0
          %1382 = vmatpush2.msra.mxu0 0.0
          %1383 = vmatprep.subr.mxu0 0.0
          %1384 = vmatpush2.msra.mxu0 0.0
          %1385 = vmatprep.subr.mxu0 0.0
          %1386 = vmatpush2.msra.mxu0 0.0
          %1387 = vmatprep.mubr.f32.mxu0 0.0
          %1388 = vmatmul.mubr.f32.gmra.mxu0 %v1102
          %v1389 = vpop.f32.mrf.mxu0
          %v1390 = vadd.f32 0.0, %v1389
          %v1391 = vpop.f32.mrf.mxu0
          %1392 = vmatprep.mubr.f32.mxu0 0.0
          %1393 = vmatmul.mubr.f32.gmra.mxu0 %v1105
          %v1394 = vpop.f32.mrf.mxu0
          %v1395 = vadd.f32 0.0, %v1394
          %v1396 = vpop.f32.mrf.mxu0
          %1397 = vmatprep.mubr.f32.mxu0 0.0
          %1398 = vmatmul.mubr.f32.gmra.mxu0 %v1108
          %v1399 = vpop.f32.mrf.mxu0
          %v1400 = vadd.f32 0.0, %v1399
          %v1401 = vpop.f32.mrf.mxu0
          %1402 = vmatprep.mubr.f32.mxu0 0.0
          %1403 = vmatmul.mubr.f32.gmra.mxu0 %v1111
          %v1404 = vpop.f32.mrf.mxu0
          %v1405 = vadd.f32 0.0, %v1404
          %v1406 = vpop.f32.mrf.mxu0
          %1407 = vdwg.mxu0
          %v1408 = vmul.f32 %v1390, %v1061
          %v1409 = vmul.f32 %v1395, %v1062
          %v1410 = vmul.f32 %v1400, %v1063
          %v1411 = vmul.f32 %v1405, %v1064
          %1412 = vrot.lane.b32.xlu0 %v1017, 126
          %v1413 = vpop.permute.xlu0 %1412
          %1414 = vrot.lane.b32.xlu0 %v1018, 126
          %v1415 = vpop.permute.xlu0 %1414
          %1416 = vrot.lane.b32.xlu0 %v1019, 126
          %v1417 = vpop.permute.xlu0 %1416
          %1418 = vrot.lane.b32.xlu0 %v1020, 126
          %v1419 = vpop.permute.xlu0 %1418
          %v1425 = vsel %vm498, %v1408, 0
          %v1428 = vsel %vm498, %v1409, 0
          %v1431 = vsel %vm498, %v1410, 0
          %v1434 = vsel %vm498, %v1411, 0
          %1436 = vmatprep.subr.mxu0 0.0
          %1437 = vmatpush1.msra.mxu0 0.0
          %1438 = vmatprep.subr.mxu0 0.0
          %1439 = vmatpush1.msra.mxu0 0.0
          %1440 = vmatprep.subr.mxu0 0.0
          %1441 = vmatpush1.msra.mxu0 0.0
          %1442 = vmatprep.subr.mxu0 0.0
          %1443 = vmatpush1.msra.mxu0 0.0
          %1444 = vmatprep.subr.mxu0 0.0
          %1445 = vmatpush1.msra.mxu0 0.0
          %1446 = vmatprep.subr.mxu0 0.0
          %1447 = vmatpush1.msra.mxu0 0.0
          %1448 = vmatprep.subr.mxu0 0.0
          %1449 = vmatpush1.msra.mxu0 0.0
          %1450 = vmatprep.subr.mxu0 0.0
          %1451 = vmatpush1.msra.mxu0 0.0
          %1452 = vmatprep.subr.mxu0 0.0
          %1453 = vmatpush1.msra.mxu0 0.0
          %1454 = vmatprep.subr.mxu0 0.0
          %1455 = vmatpush1.msra.mxu0 0.0
          %1456 = vmatprep.subr.mxu0 0.0
          %1457 = vmatpush1.msra.mxu0 0.0
          %1458 = vmatprep.subr.mxu0 0.0
          %1459 = vmatpush1.msra.mxu0 0.0
          %1460 = vmatprep.subr.mxu0 0.0
          %1461 = vmatpush1.msra.mxu0 %v1419
          %1462 = vmatprep.subr.mxu0 0.0
          %1463 = vmatpush1.msra.mxu0 %v1417
          %1464 = vmatprep.subr.mxu0 0.0
          %1465 = vmatpush1.msra.mxu0 %v1415
          %1466 = vmatprep.subr.mxu0 0.0
          %1467 = vmatpush1.msra.mxu0 %v1413
          %1468 = vmatprep.subr.mxu0 0.0
          %1469 = vmatpush2.msra.mxu0 0.0
          %1470 = vmatprep.subr.mxu0 0.0
          %1471 = vmatpush2.msra.mxu0 0.0
          %1472 = vmatprep.subr.mxu0 0.0
          %1473 = vmatpush2.msra.mxu0 0.0
          %1474 = vmatprep.subr.mxu0 0.0
          %1475 = vmatpush2.msra.mxu0 0.0
          %1476 = vmatprep.subr.mxu0 0.0
          %1477 = vmatpush2.msra.mxu0 0.0
          %1478 = vmatprep.subr.mxu0 0.0
          %1479 = vmatpush2.msra.mxu0 0.0
          %1480 = vmatprep.subr.mxu0 0.0
          %1481 = vmatpush2.msra.mxu0 0.0
          %1482 = vmatprep.subr.mxu0 0.0
          %1483 = vmatpush2.msra.mxu0 0.0
          %1484 = vmatprep.subr.mxu0 0.0
          %1485 = vmatpush2.msra.mxu0 0.0
          %1486 = vmatprep.subr.mxu0 0.0
          %1487 = vmatpush2.msra.mxu0 0.0
          %1488 = vmatprep.subr.mxu0 0.0
          %1489 = vmatpush2.msra.mxu0 0.0
          %1490 = vmatprep.subr.mxu0 0.0
          %1491 = vmatpush2.msra.mxu0 0.0
          %1492 = vmatprep.subr.mxu0 0.0
          %1493 = vmatpush2.msra.mxu0 0.0
          %1494 = vmatprep.subr.mxu0 0.0
          %1495 = vmatpush2.msra.mxu0 0.0
          %1496 = vmatprep.subr.mxu0 0.0
          %1497 = vmatpush2.msra.mxu0 0.0
          %1498 = vmatprep.subr.mxu0 0.0
          %1499 = vmatpush2.msra.mxu0 0.0
          %1500 = vmatprep.mubr.f32.mxu0 0.0
          %1501 = vmatmul.mubr.f32.gmra.mxu0 %v1425
          %v1502 = vpop.f32.mrf.mxu0
          %v1503 = vadd.f32 0.0, %v1502
          %v1504 = vpop.f32.mrf.mxu0
          %1505 = vmatprep.mubr.f32.mxu0 0.0
          %1506 = vmatmul.mubr.f32.gmra.mxu0 %v1428
          %v1507 = vpop.f32.mrf.mxu0
          %v1508 = vadd.f32 0.0, %v1507
          %v1509 = vpop.f32.mrf.mxu0
          %1510 = vmatprep.mubr.f32.mxu0 0.0
          %1511 = vmatmul.mubr.f32.gmra.mxu0 %v1431
          %v1512 = vpop.f32.mrf.mxu0
          %v1513 = vadd.f32 0.0, %v1512
          %v1514 = vpop.f32.mrf.mxu0
          %1515 = vmatprep.mubr.f32.mxu0 0.0
          %1516 = vmatmul.mubr.f32.gmra.mxu0 %v1434
          %v1517 = vpop.f32.mrf.mxu0
          %v1518 = vadd.f32 0.0, %v1517
          %v1519 = vpop.f32.mrf.mxu0
          %1520 = vdwg.mxu0
          %v1521 = vmul.f32 %v1180, 0.001953125
          %v1522 = vmul.f32 %v1185, 0.001953125
          %v1523 = vmul.f32 %v1190, 0.001953125
          %v1524 = vmul.f32 %v1195, 0.001953125
          %v1525 = vadd.f32 %v1521, %v1281
          %v1526 = vadd.f32 %v1522, %v1286
          %v1527 = vadd.f32 %v1523, %v1291
          %v1528 = vadd.f32 %v1524, %v1296
          %v1529 = vmul.f32 %v1503, 0.001953125
          %v1530 = vmul.f32 %v1508, 0.001953125
          %v1531 = vmul.f32 %v1513, 0.001953125
          %v1532 = vmul.f32 %v1518, 0.001953125
          %v1533 = vmul.f32 %v1521, %v1521
          %v1534 = vmul.f32 %v1522, %v1522
          %v1535 = vmul.f32 %v1523, %v1523
          %v1536 = vmul.f32 %v1524, %v1524
          %v1537 = vsub.f32 %v1529, %v1533
          %v1538 = vsub.f32 %v1530, %v1534
          %v1539 = vsub.f32 %v1531, %v1535
          %v1540 = vsub.f32 %v1532, %v1536
          %v1541 = vadd.f32 %v1537, 1e-05
          %v1542 = vadd.f32 %v1538, 1e-05
          %v1543 = vadd.f32 %v1539, 1e-05
          %v1544 = vadd.f32 %v1540, 1e-05
          %v1545 = vrsqrt.pop %v1541
          %v1546 = vrsqrt.pop %v1542
          %v1547 = vrsqrt.pop %v1543
          %v1548 = vrsqrt.pop %v1544
          %1553 = vrot.lane.b32.xlu0 %v1545, 4
          %v1554 = vpop.permute.xlu0 %1553
          %1555 = vrot.lane.b32.xlu0 %v1546, 4
          %v1556 = vpop.permute.xlu0 %1555
          %1557 = vrot.lane.b32.xlu0 %v1547, 4
          %v1558 = vpop.permute.xlu0 %1557
          %1559 = vrot.lane.b32.xlu0 %v1548, 4
          %v1560 = vpop.permute.xlu0 %1559
          %v1565 = vmul.f32 %v946, %v1554
          %v1566 = vmul.f32 %v947, %v1556
          %v1567 = vmul.f32 %v948, %v1558
          %v1568 = vmul.f32 %v949, %v1560
          %1573 = vrot.lane.b32.xlu0 %v1525, 4
          %v1574 = vpop.permute.xlu0 %1573
          %1575 = vrot.lane.b32.xlu0 %v1526, 4
          %v1576 = vpop.permute.xlu0 %1575
          %1577 = vrot.lane.b32.xlu0 %v1527, 4
          %v1578 = vpop.permute.xlu0 %1577
          %1579 = vrot.lane.b32.xlu0 %v1528, 4
          %v1580 = vpop.permute.xlu0 %1579
          %v1585 = vmul.f32 %v1565, %v1574
          %v1586 = vmul.f32 %v1566, %v1576
          %v1587 = vmul.f32 %v1567, %v1578
          %v1588 = vmul.f32 %v1568, %v1580
          %1593 = vrot.lane.b32.xlu0 %v1585, 1
          %v1594 = vpop.permute.xlu0 %1593
          %1595 = vrot.lane.b32.xlu0 %v1586, 1
          %v1596 = vpop.permute.xlu0 %1595
          %1597 = vrot.lane.b32.xlu0 %v1587, 1
          %v1598 = vpop.permute.xlu0 %1597
          %1599 = vrot.lane.b32.xlu0 %v1588, 1
          %v1600 = vpop.permute.xlu0 %1599
          %v1605 = vsub.f32 %v946, %v1594
          %v1606 = vsub.f32 %v947, %v1596
          %v1607 = vsub.f32 %v948, %v1598
          %v1608 = vsub.f32 %v949, %v1600
          %vm1609 = vcmask 7168
          %1610 = vst.msk [vmem:[#allocation4] sm:$0xff] %vm1609, %v1413
          %1611 = vst.msk [vmem:[#allocation4 + $0x8] sm:$0xff] %vm1609, %v1415
          %1612 = vst.msk [vmem:[#allocation4 + $0x10] sm:$0xff] %vm1609, %v1417
          %1613 = vst.msk [vmem:[#allocation4 + $0x18] sm:$0xff] %vm1609, %v1419
          %1614 = vrot.lane.b32.xlu0 %v1057, 126
          %v1615 = vpop.permute.xlu0 %1614
          %1616 = vrot.lane.b32.xlu0 %v1058, 126
          %v1617 = vpop.permute.xlu0 %1616
          %1618 = vrot.lane.b32.xlu0 %v1059, 126
          %v1619 = vpop.permute.xlu0 %1618
          %1620 = vrot.lane.b32.xlu0 %v1060, 126
          %v1621 = vpop.permute.xlu0 %1620
          %vm1626 = vcmask 15368
          %1627 = vst.msk [vmem:[#allocation4] sm:$0xff] %vm1626, %v1615
          %1628 = vst.msk [vmem:[#allocation4 + $0x8] sm:$0xff] %vm1626, %v1617
          %1629 = vst.msk [vmem:[#allocation4 + $0x10] sm:$0xff] %vm1626, %v1619
          %1630 = vst.msk [vmem:[#allocation4 + $0x18] sm:$0xff] %vm1626, %v1621
          %1635 = vrot.lane.b32.xlu0 %v1565, 126
          %v1636 = vpop.permute.xlu0 %1635
          %1637 = vrot.lane.b32.xlu0 %v1566, 126
          %v1638 = vpop.permute.xlu0 %1637
          %1639 = vrot.lane.b32.xlu0 %v1567, 126
          %v1640 = vpop.permute.xlu0 %1639
          %1641 = vrot.lane.b32.xlu0 %v1568, 126
          %v1642 = vpop.permute.xlu0 %1641
          %vm1647 = vcmask 23568
          %1648 = vst.msk [vmem:[#allocation4] sm:$0xff] %vm1647, %v1636
          %1649 = vst.msk [vmem:[#allocation4 + $0x8] sm:$0xff] %vm1647, %v1638
          %1650 = vst.msk [vmem:[#allocation4 + $0x10] sm:$0xff] %vm1647, %v1640
          %1651 = vst.msk [vmem:[#allocation4 + $0x18] sm:$0xff] %vm1647, %v1642
          %1656 = vrot.lane.b32.xlu0 %v1605, 126
          %v1657 = vpop.permute.xlu0 %1656
          %1658 = vrot.lane.b32.xlu0 %v1606, 126
          %v1659 = vpop.permute.xlu0 %1658
          %1660 = vrot.lane.b32.xlu0 %v1607, 126
          %v1661 = vpop.permute.xlu0 %1660
          %1662 = vrot.lane.b32.xlu0 %v1608, 126
          %v1663 = vpop.permute.xlu0 %1662
          %vm1668 = vcmask 31768
          %1669 = vst.msk [vmem:[#allocation4] sm:$0xff] %vm1668, %v1657
          %1670 = vst.msk [vmem:[#allocation4 + $0x8] sm:$0xff] %vm1668, %v1659
          %1671 = vst.msk [vmem:[#allocation4 + $0x10] sm:$0xff] %vm1668, %v1661
          %1672 = vst.msk [vmem:[#allocation4 + $0x18] sm:$0xff] %vm1668, %v1663
        $region80: #{tpu_custom_call.1} parent=47 // pred_fallthru
          _
        // Predicated region
        $region81: #{tpu_custom_call.1} parent=47 // pred_check
          %p1673 = pneg %p933
        $region82: #{tpu_custom_call.1} parent=47 // pred_check_branch
          %1675 = sbr.rel (%p1673) target = $region84
        $region83: #{tpu_custom_call.1} parent=47 // pred_region
          %v1676 = vld [vmem:[#allocation4] sm:$0xff]
          %v1677 = vld [vmem:[#allocation4 + $0x8] sm:$0xff]
          %v1678 = vld [vmem:[#allocation4 + $0x10] sm:$0xff]
          %v1679 = vld [vmem:[#allocation4 + $0x18] sm:$0xff]
          %1681 = vset.pattern.permute.xlu0 0
          %1682 = vperm.xlu0 %1681, %v1676
          %v1683 = vpop.permute.xlu0 %1682
          %1686 = vset.pattern.permute.xlu0 0
          %1687 = vperm.xlu0 %1686, %v1677
          %v1688 = vpop.permute.xlu0 %1687
          %1691 = vset.pattern.permute.xlu0 0
          %1692 = vperm.xlu0 %1691, %v1678
          %v1693 = vpop.permute.xlu0 %1692
          %1696 = vset.pattern.permute.xlu0 0
          %1697 = vperm.xlu0 %1696, %v1679
          %v1698 = vpop.permute.xlu0 %1697
          %v1700 = vmul.f32 %v1683, %v794
          %v1701 = vmul.f32 %v1688, %v799
          %v1702 = vmul.f32 %v1693, %v804
          %v1703 = vmul.f32 %v1698, %v809
          %1704 = vset.pattern.permute.xlu0 1
          %1705 = vperm.xlu0 %1704, %v1676
          %v1706 = vpop.permute.xlu0 %1705
          %1708 = vset.pattern.permute.xlu0 1
          %1709 = vperm.xlu0 %1708, %v1677
          %v1710 = vpop.permute.xlu0 %1709
          %1712 = vset.pattern.permute.xlu0 1
          %1713 = vperm.xlu0 %1712, %v1678
          %v1714 = vpop.permute.xlu0 %1713
          %1716 = vset.pattern.permute.xlu0 1
          %1717 = vperm.xlu0 %1716, %v1679
          %v1718 = vpop.permute.xlu0 %1717
          %v1720 = vadd.f32 %v1700, %v1706
          %v1721 = vadd.f32 %v1701, %v1710
          %v1722 = vadd.f32 %v1702, %v1714
          %v1723 = vadd.f32 %v1703, %v1718
          %v1724 = vld [vmem:[#allocation13] sm:$0xff]
          %v1725 = vld [vmem:[#allocation13 + $0x8] sm:$0xff]
          %v1726 = vld [vmem:[#allocation13 + $0x10] sm:$0xff]
          %v1727 = vld [vmem:[#allocation13 + $0x18] sm:$0xff]
          %v1729 = vsel %vm498, %v1724, 0
          %v1732 = vsel %vm498, %v1725, 0
          %v1735 = vsel %vm498, %v1726, 0
          %v1738 = vsel %vm498, %v1727, 0
          %1740 = vmatprep.subr.mxu0 0.0
          %1741 = vmatpush1.msra.mxu0 0.0
          %1742 = vmatprep.subr.mxu0 0.0
          %1743 = vmatpush1.msra.mxu0 0.0
          %1744 = vmatprep.subr.mxu0 0.0
          %1745 = vmatpush1.msra.mxu0 0.0
          %1746 = vmatprep.subr.mxu0 0.0
          %1747 = vmatpush1.msra.mxu0 0.0
          %1748 = vmatprep.subr.mxu0 0.0
          %1749 = vmatpush1.msra.mxu0 0.0
          %1750 = vmatprep.subr.mxu0 0.0
          %1751 = vmatpush1.msra.mxu0 0.0
          %1752 = vmatprep.subr.mxu0 0.0
          %1753 = vmatpush1.msra.mxu0 0.0
          %1754 = vmatprep.subr.mxu0 0.0
          %1755 = vmatpush1.msra.mxu0 0.0
          %1756 = vmatprep.subr.mxu0 0.0
          %1757 = vmatpush1.msra.mxu0 0.0
          %1758 = vmatprep.subr.mxu0 0.0
          %1759 = vmatpush1.msra.mxu0 0.0
          %1760 = vmatprep.subr.mxu0 0.0
          %1761 = vmatpush1.msra.mxu0 0.0
          %1762 = vmatprep.subr.mxu0 0.0
          %1763 = vmatpush1.msra.mxu0 0.0
          %1764 = vmatprep.subr.mxu0 0.0
          %1765 = vmatpush1.msra.mxu0 %v1723
          %1766 = vmatprep.subr.mxu0 0.0
          %1767 = vmatpush1.msra.mxu0 %v1722
          %1768 = vmatprep.subr.mxu0 0.0
          %1769 = vmatpush1.msra.mxu0 %v1721
          %1770 = vmatprep.subr.mxu0 0.0
          %1771 = vmatpush1.msra.mxu0 %v1720
          %1772 = vmatprep.subr.mxu0 0.0
          %1773 = vmatpush2.msra.mxu0 0.0
          %1774 = vmatprep.subr.mxu0 0.0
          %1775 = vmatpush2.msra.mxu0 0.0
          %1776 = vmatprep.subr.mxu0 0.0
          %1777 = vmatpush2.msra.mxu0 0.0
          %1778 = vmatprep.subr.mxu0 0.0
          %1779 = vmatpush2.msra.mxu0 0.0
          %1780 = vmatprep.subr.mxu0 0.0
          %1781 = vmatpush2.msra.mxu0 0.0
          %1782 = vmatprep.subr.mxu0 0.0
          %1783 = vmatpush2.msra.mxu0 0.0
          %1784 = vmatprep.subr.mxu0 0.0
          %1785 = vmatpush2.msra.mxu0 0.0
          %1786 = vmatprep.subr.mxu0 0.0
          %1787 = vmatpush2.msra.mxu0 0.0
          %1788 = vmatprep.subr.mxu0 0.0
          %1789 = vmatpush2.msra.mxu0 0.0
          %1790 = vmatprep.subr.mxu0 0.0
          %1791 = vmatpush2.msra.mxu0 0.0
          %1792 = vmatprep.subr.mxu0 0.0
          %1793 = vmatpush2.msra.mxu0 0.0
          %1794 = vmatprep.subr.mxu0 0.0
          %1795 = vmatpush2.msra.mxu0 0.0
          %1796 = vmatprep.subr.mxu0 0.0
          %1797 = vmatpush2.msra.mxu0 0.0
          %1798 = vmatprep.subr.mxu0 0.0
          %1799 = vmatpush2.msra.mxu0 0.0
          %1800 = vmatprep.subr.mxu0 0.0
          %1801 = vmatpush2.msra.mxu0 0.0
          %1802 = vmatprep.subr.mxu0 0.0
          %1803 = vmatpush2.msra.mxu0 0.0
          %1804 = vmatprep.mubr.f32.mxu0 0.0
          %1805 = vmatmul.mubr.f32.gmra.mxu0 %v1729
          %v1806 = vpop.f32.mrf.mxu0
          %v1807 = vadd.f32 0.0, %v1806
          %v1808 = vpop.f32.mrf.mxu0
          %1809 = vmatprep.mubr.f32.mxu0 0.0
          %1810 = vmatmul.mubr.f32.gmra.mxu0 %v1732
          %v1811 = vpop.f32.mrf.mxu0
          %v1812 = vadd.f32 0.0, %v1811
          %v1813 = vpop.f32.mrf.mxu0
          %1814 = vmatprep.mubr.f32.mxu0 0.0
          %1815 = vmatmul.mubr.f32.gmra.mxu0 %v1735
          %v1816 = vpop.f32.mrf.mxu0
          %v1817 = vadd.f32 0.0, %v1816
          %v1818 = vpop.f32.mrf.mxu0
          %1819 = vmatprep.mubr.f32.mxu0 0.0
          %1820 = vmatmul.mubr.f32.gmra.mxu0 %v1738
          %v1821 = vpop.f32.mrf.mxu0
          %v1822 = vadd.f32 0.0, %v1821
          %v1823 = vpop.f32.mrf.mxu0
          %1824 = vdwg.mxu0
          %1825 = vset.pattern.permute.xlu0 2
          %1826 = vperm.xlu0 %1825, %v1676
          %v1827 = vpop.permute.xlu0 %1826
          %1829 = vset.pattern.permute.xlu0 2
          %1830 = vperm.xlu0 %1829, %v1677
          %v1831 = vpop.permute.xlu0 %1830
          %1833 = vset.pattern.permute.xlu0 2
          %1834 = vperm.xlu0 %1833, %v1678
          %v1835 = vpop.permute.xlu0 %1834
          %1837 = vset.pattern.permute.xlu0 2
          %1838 = vperm.xlu0 %1837, %v1679
          %v1839 = vpop.permute.xlu0 %1838
          %v1841 = vmul.f32 %v1827, %v1807
          %v1842 = vmul.f32 %v1831, %v1812
          %v1843 = vmul.f32 %v1835, %v1817
          %v1844 = vmul.f32 %v1839, %v1822
          %1845 = vset.pattern.permute.xlu0 3
          %1846 = vperm.xlu0 %1845, %v1676
          %v1847 = vpop.permute.xlu0 %1846
          %1849 = vset.pattern.permute.xlu0 3
          %1850 = vperm.xlu0 %1849, %v1677
          %v1851 = vpop.permute.xlu0 %1850
          %1853 = vset.pattern.permute.xlu0 3
          %1854 = vperm.xlu0 %1853, %v1678
          %v1855 = vpop.permute.xlu0 %1854
          %1857 = vset.pattern.permute.xlu0 3
          %1858 = vperm.xlu0 %1857, %v1679
          %v1859 = vpop.permute.xlu0 %1858
          %v1861 = vadd.f32 %v1841, %v1847
          %v1862 = vadd.f32 %v1842, %v1851
          %v1863 = vadd.f32 %v1843, %v1855
          %v1864 = vadd.f32 %v1844, %v1859
          %v1865 = vmax.f32 %v1861, 0.0
          %v1866 = vmax.f32 %v1862, 0.0
          %v1867 = vmax.f32 %v1863, 0.0
          %v1868 = vmax.f32 %v1864, 0.0
          %1869 = vst [vmem:[%s451] sm:$0xff] %v1865
          %1870 = vst [vmem:[%s451 + $0x8] sm:$0xff] %v1866
          %1871 = vst [vmem:[%s451 + $0x10] sm:$0xff] %v1867
          %1872 = vst [vmem:[%s451 + $0x18] sm:$0xff] %v1868
          %1873 = vst [vmem:[%s457] sm:$0x1] %v702
        $region84: #{tpu_custom_call.1} parent=47 // pred_fallthru
          _
        %s1874 = sand.u32 %s229, 1
        %s1875 = scalar_lea.sflag [#allocation7], %s1874
        %s1876 = sand.u32 %s229, 1
        %s1877 = smul.addr %s1876, 32
        %s1878 = scalar_lea.vmem [#allocation14], %s1877
        %s1879 = sand.u32 %s263, 1
        %s1880 = scalar_lea.sflag [#allocation16], %s1879
        %s1881 = sand.u32 %s263, 1
        %s1882 = scalar_lea.vmem [#allocation15], %s1881
        // Predicated region
        $region85: #{tpu_custom_call.1} parent=47 // pred_check
          %p1883 = pneg %p239
        $region86: #{tpu_custom_call.1} parent=47 // pred_check_branch
          %1885 = sbr.rel (%p1883) target = $region88
        $region87: #{tpu_custom_call.1} parent=47 // pred_region
          %p1886 = scmp.eq.s32.totalorder %s38, 1
          %s1887 = scalar_select %p1886, %s39, 0
          %s1888 = scalar_select %p1886, %s40, 0
          %s1890 = ssub.s32 512, 512
          %1891 = vsyncadd %s1875, %s1890
          %s1892 = smul.addr %s1887, 8
          %s1893 = sadd.s32 %s1888, %s1892
          %s1894 = smul.addr %s1893, 128
          %s1895 = scalar_lea.hbm %s7, %s1894
          %s1896 = sshll.u32 %s1878, 4
          %s1897 = int_to_ptr.vmem [resolvable:$true] %s1896
          %1902 = dma.vmem_to_hbm [thread:$0]  %s1897, 512, %s1895, %s1875, 128, 256, 8
        $region88: #{tpu_custom_call.1} parent=47 // pred_fallthru
          _
        // Predicated region
        $region89: #{tpu_custom_call.1} parent=47 // pred_check
          %p1903 = pneg %p273
        $region90: #{tpu_custom_call.1} parent=47 // pred_check_branch
          %1905 = sbr.rel (%p1903) target = $region92
        $region91: #{tpu_custom_call.1} parent=47 // pred_region
          %p1906 = scmp.eq.s32.totalorder %s38, 1
          %s1907 = scalar_select %p1906, %s39, 0
          %s1908 = scalar_select %p1906, %s40, 0
          %s1910 = ssub.s32 16, 16
          %1911 = vsyncadd %s1880, %s1910
          %s1912 = smul.addr %s1907, 2
          %s1913 = sadd.s32 %s1908, %s1912
          %s1914 = smul.addr %s1913, 16
          %s1915 = scalar_lea.hbm %s8, %s1914
          %s1917 = sshll.u32 %s1882, 4
          %s1918 = int_to_ptr.vmem [resolvable:$true] %s1917
          %1920 = dma.vmem_to_hbm [thread:$0]  %s1918, 16, %s1915, %s1880
        $region92: #{tpu_custom_call.1} parent=47 // pred_fallthru
          _
      $region48: #{tpu_custom_call.1} parent=5 // pred_fallthru
        _
      %p1921 = scmp.le.s32.totalorder 2, %s28
      // Predicated region
      $region93: #{tpu_custom_call.1} parent=5 // pred_check
        %p1922 = pneg %p1921
      $region94: #{tpu_custom_call.1} parent=5 // pred_check_branch
        %1924 = sbr.rel (%p1922) target = $region96
      $region95: #{tpu_custom_call.1} parent=5 // pred_region
        %s1925 = ssub.s32 %s28, 2
        // Predicated region
        $region97: #{tpu_custom_call.1} parent=95 // pred_check
          %p1926 = pneg %p245
        $region98: #{tpu_custom_call.1} parent=95 // pred_check_branch
          %1928 = sbr.rel (%p1926) target = $region100
        $region99: #{tpu_custom_call.1} parent=95 // pred_region
          %s1929 = sand.u32 %s230, 1
          %s1930 = scalar_lea.sflag [#allocation7], %s1929
          %s1931 = sand.u32 %s230, 1
          %s1932 = smul.addr %s1931, 32
          %s1933 = scalar_lea.vmem [#allocation14], %s1932
          %1934 = dma.done %s1930, 512
        $region100: #{tpu_custom_call.1} parent=95 // pred_fallthru
          _
        // Predicated region
        $region101: #{tpu_custom_call.1} parent=95 // pred_check
          %p1935 = pneg %p279
        $region102: #{tpu_custom_call.1} parent=95 // pred_check_branch
          %1937 = sbr.rel (%p1935) target = $region104
        $region103: #{tpu_custom_call.1} parent=95 // pred_region
          %s1938 = sand.u32 %s264, 1
          %s1939 = scalar_lea.sflag [#allocation16], %s1938
          %s1940 = sand.u32 %s264, 1
          %s1941 = scalar_lea.vmem [#allocation15], %s1940
          %1942 = dma.done %s1939, 16
        $region104: #{tpu_custom_call.1} parent=95 // pred_fallthru
          _
      $region96: #{tpu_custom_call.1} parent=5 // pred_fallthru
        _
    $region6: #{tpu_custom_call.1} parent=1 // loop_footer
      %s32 = sadd.s32 1, %s28
    $region7: #{tpu_custom_call.1} parent=1 // loop_footer_branch
      %27 = sbr.rel target = $region3
    $region8: #{tpu_custom_call.1} parent=1 // loop_exit
      _
    %1943 = vsyncpa [#allocation6], 1
    %s1944 = scalar_lea.sflag [#allocation6], 1
    %1945 = vsyncpa %s1944, 1
    %1946 = vsyncpa [#allocation9], 1
    %s1947 = scalar_lea.sflag [#allocation9], 1
    %1948 = vsyncpa %s1947, 1
    %1949 = vsyncpa [#allocation12], 1
    %1950 = vsyncpa [#allocation7], 1
    %s1951 = scalar_lea.sflag [#allocation7], 1
    %1952 = vsyncpa %s1951, 1
    %1953 = vsyncpa [#allocation16], 1
    %s1954 = scalar_lea.sflag [#allocation16], 1
    %1955 = vsyncpa %s1954, 1

</llo_original>
